<compile_context>
chip_gen: v5e
topology: v5e:2x2
jax: 0.10.0
libtpu: 0.0.40
codegen_flags: <defaults>
</compile_context>

<pallas_src>
import functools
from typing import NamedTuple

import jax
import jax.numpy as jnp
from jax import lax
from jax.experimental import pallas as pl
from jax.experimental.pallas import tpu as pltpu

NEG_SLOPE = 0.01   # nn.LeakyReLU default
BN_EPS = 1e-5

_VMEM = pl.BlockSpec(memory_space=pltpu.MemorySpace.VMEM)
_SMEM = pl.BlockSpec(memory_space=pltpu.MemorySpace.SMEM)


def _leaky(x):
    # LeakyReLU with 0 < slope < 1: max(x, slope*x) == where(x>0, x, slope*x).
    return jnp.maximum(x, NEG_SLOPE * x)


def _recip(s):
    # EUP approx reciprocal + one Newton step: divide stays off the VALU,
    # relative error ~eps^2 (well inside the 1e-3 reference tolerance).
    r = pl.reciprocal(s, approx=True)
    return r * (2.0 - s * r)


def _softmax_lastaxis(z):
    z = z - jnp.max(z, axis=-1, keepdims=True)
    e = jnp.exp(z)
    return e * _recip(jnp.sum(e, axis=-1, keepdims=True))


# ----------------------------------------------------------------------------
# Parameter-slab layout: one lane-dense (rows, 128) f32 array, every section
# starting on an 8-row (sublane-tile) boundary so in-kernel windows stay
# aligned.  Built once offline -> a single HBM->VMEM DMA per kernel launch.
# ----------------------------------------------------------------------------
class _SlabLayout(NamedTuple):
    lanes: int
    rows: int
    r_ws12: int    # [ws1 | ws2]                       (d, 2*(2Hc+d))
    r_ws3: int     # skip3 conv weights                (Ni, 2Hc+Ni)
    r_w12: int     # mask [fc1 | fc2] weights          (Ni, 2Hk)
    r_w3m: int     # mask fc3 weights                  (Hk, Ni)
    r_bst12: int   # [bias;scale;shift] for ws12 cols  (3, 2*(2Hc+d))
    r_bst3: int    # [bias;scale;shift] for ws3 cols   (3, 2Hc+Ni)
    r_misc: int    # [b12 (2Hk) | b3m (Ni) | w4 row (Hk)]   (1, 2Hk+Ni+Hk)


def _ru(n, m):
    return -(-n // m) * m


def _slab_layout(d, ni, h_c, h_k):
    widths = [2 * (2 * h_c + d), 2 * h_c + ni, 2 * h_k, ni, 2 * h_k + ni + h_k]
    lanes = _ru(max(widths + [128]), 128)
    r_ws12 = 0
    r_ws3 = r_ws12 + _ru(d, 8)
    r_w12 = r_ws3 + _ru(ni, 8)
    r_w3m = r_w12 + _ru(ni, 8)
    r_bst12 = r_w3m + _ru(h_k, 8)
    r_bst3 = r_bst12 + 8
    r_misc = r_bst3 + 8
    rows = r_misc + 8
    return _SlabLayout(lanes, rows, r_ws12, r_ws3, r_w12, r_w3m,
                       r_bst12, r_bst3, r_misc)


# ----------------------------------------------------------------------------
# The single fused kernel (closed over static shape config + slab layout)
# ----------------------------------------------------------------------------
def _make_kernel(nx, ni, d, h_c, h_k, n_bag, lay):
    wc = 2 * (2 * h_c + d)        # fused skip|skip2 conv output width
    w3w = 2 * h_c + ni            # skip3 conv output width

    def _attention(h, residual, hc):
        """SkipConnectBlock attention stage on a (N, 2Hc+dout) activation tile."""
        x1 = h[:, :hc]
        x2 = h[:, hc:2 * hc]
        x3 = h[:, 2 * hc:]
        # torch: feat = X1 @ X2 (N,N), Softmax(dim=1).  Work on feat.T so the
        # softmax max/sum reductions run on the lane axis; dot_general absorbs
        # the transposes (no materialized .T feeding the MXU).
        featT = lax.dot_general(x2, x1, (((1,), (1,)), ((), ())),
                                preferred_element_type=jnp.float32)   # (N, N)
        featT = _softmax_lastaxis(featT)
        # out[i,k] = sum_j feat_sm[i,j]*x3[j,k] = sum_j featT[j,i]*x3[j,k]
        out = lax.dot_general(featT, x3, (((0,), (0,)), ((), ())),
                              preferred_element_type=jnp.float32)
        return out + residual

    def kernel(idx_ref, x_ref, ins_ref, p_ref, o_ref):
        x = x_ref[...]                                              # (Nx, d)
        ins = ins_ref[...]                                          # (Ni, d)

        # --- skip & skip2 conv/LeakyReLU/BN stages fused into ONE MXU dot ----
        xi = jnp.concatenate([x, ins], axis=0)                      # (Nx+Ni, d)
        w12 = p_ref[lay.r_ws12:lay.r_ws12 + d, 0:wc]                # (d, 128)
        bst12 = p_ref[lay.r_bst12:lay.r_bst12 + 3, 0:wc]            # (3, 128)
        z = jnp.dot(xi, w12, preferred_element_type=jnp.float32) + bst12[0:1, :]
        h = _leaky(z) * bst12[1:2, :] + bst12[2:3, :]               # (Nx+Ni, 128)
        # rows 0:Nx / cols 0:wc/2  -> skip(X); rows Nx: / cols wc/2: -> skip2(ins)
        x_skip = _attention(h[:nx, 0:wc // 2], x, h_c)              # (Nx, d)
        ins_skip = _attention(h[nx:, wc // 2:wc], ins, h_c)         # (Ni, d)

        # --- sklearn euclidean_distances(x_skip, ins_skip), in VMEM ----------
        ab = lax.dot_general(x_skip, ins_skip, (((1,), (1,)), ((), ())),
                             preferred_element_type=jnp.float32)    # (Nx, Ni)
        aa = jnp.sum(x_skip * x_skip, axis=1, keepdims=True)        # (Nx, 1)
        # (1, Ni) squared-norm row via a ones-vector dot: avoids the
        # (Ni,1)->(1,Ni) sublane->lane relayout on the already-busy XLU.
        bb = lax.dot_general(jnp.ones((1, d), jnp.float32), ins_skip * ins_skip,
                             (((1,), (1,)), ((), ())),
                             preferred_element_type=jnp.float32)    # (1, Ni)
        affinity = jnp.sqrt(jnp.maximum(aa - 2.0 * ab + bb, 0.0))   # (Nx, Ni)

        # --- skip3 on the affinity matrix ------------------------------------
        ws3 = p_ref[lay.r_ws3:lay.r_ws3 + ni, 0:w3w]                # (Ni, 2Hc+Ni)
        bst3 = p_ref[lay.r_bst3:lay.r_bst3 + 3, 0:w3w]              # (3, 2Hc+Ni)
        z3 = jnp.dot(affinity, ws3, preferred_element_type=jnp.float32) + bst3[0:1, :]
        h3 = _leaky(z3) * bst3[1:2, :] + bst3[2:3, :]               # (Nx, 2Hc+Ni)
        aff_skip = _attention(h3, affinity, h_c)                    # (Nx, Ni)

        # --- MaskBlock logits (final softmax & fc4 bias dropped: monotone /
        #     constant shift, so the per-bag argmax below is unchanged) -------
        w12m = p_ref[lay.r_w12:lay.r_w12 + ni, 0:2 * h_k]           # (Ni, 2Hk)
        b12 = p_ref[lay.r_misc:lay.r_misc + 1, 0:2 * h_k]           # (1, 2Hk)
        hm = jnp.dot(aff_skip, w12m, preferred_element_type=jnp.float32) + b12
        h1 = _leaky(hm[:, :h_k])                                    # fc1 + LeakyReLU
        h2 = jnp.tanh(hm[:, h_k:2 * h_k])                           # fc2 + Tanh
        # torch: matmul(X1.permute(0,2,1), X2) == h1.T @ h2 (contract instances)
        m = lax.dot_general(h1, h2, (((0,), (0,)), ((), ())),
                            preferred_element_type=jnp.float32)     # (Hk, Hk)
        w3m = p_ref[lay.r_w3m:lay.r_w3m + h_k, 0:ni]                # (Hk, Ni)
        b3m = p_ref[lay.r_misc:lay.r_misc + 1, 2 * h_k:2 * h_k + ni]
        a3 = _leaky(jnp.dot(m, w3m, preferred_element_type=jnp.float32) + b3m)
        w4row = p_ref[lay.r_misc:lay.r_misc + 1,
                      2 * h_k + ni:2 * h_k + ni + h_k]              # (1, Hk)
        # fc4 as an MXU dot: logits[j] = sum_k a3[k, j] * w4[k]
        logits = lax.dot_general(w4row, a3, (((1,), (0,)), ((), ())),
                                 preferred_element_type=jnp.float32)   # (1, Ni)

        # --- per-bag argmax + column gather + final Softmax(dim=2) -----------
        col = lax.broadcasted_iota(jnp.int32, (1, ni), 1)           # column index
        seg_id = jnp.zeros((1, ni), jnp.int32)
        for b in range(1, n_bag):                                   # static unroll
            seg_id = seg_id + (col >= idx_ref[b]).astype(jnp.int32)
        in_range = (col >= idx_ref[0]) & (col < idx_ref[n_bag])
        bag = lax.broadcasted_iota(jnp.int32, (n_bag, ni), 0)
        seg_mask = (bag == seg_id) & in_range                       # (n_bag, Ni)

        seg_max = jnp.max(jnp.where(seg_mask, logits, -1e30),
                          axis=-1, keepdims=True)                   # (n_bag, 1)
        is_max = seg_mask & (logits == seg_max)
        # first index attaining the max inside each bag (torch.argmax semantics)
        sel = jnp.min(jnp.where(is_max, col, ni), axis=-1, keepdims=True)
        sel_onehot = (col == sel).astype(jnp.float32)               # (n_bag, Ni)

        # gather selected columns via a tiny one-hot matmul on the idle MXU
        gathered = lax.dot_general(aff_skip, sel_onehot, (((1,), (1,)), ((), ())),
                                   preferred_element_type=jnp.float32)  # (Nx, n_bag)
        o_ref[...] = _softmax_lastaxis(gathered)

    return kernel


# ----------------------------------------------------------------------------
# Wrapper
# ----------------------------------------------------------------------------
@functools.partial(jax.jit, static_argnames=("h_c", "h_k"))
def knowledge_bag_fuse_forward(x, ins_space, ins_idx, p_slab, *, h_c, h_k):
    """x: (1, Nx, d), ins_space: (1, Ni, d), ins_idx: int32 (n_bag+1,),
    p_slab: packed parameter slab from pack_params() -> (1, Nx, n_bag)."""
    x2d = x[0]
    ins2d = ins_space[0]
    nx, d = x2d.shape
    ni = ins2d.shape[0]
    n_bag = ins_idx.shape[0] - 1
    lay = _slab_layout(d, ni, h_c, h_k)
    kernel = _make_kernel(nx, ni, d, h_c, h_k, n_bag, lay)

    # Advisory scheduling hint for XLA (cheap, lets it overlap neighbours).
    flops = 2 * ((nx + ni) * d * 2 * (2 * h_c + d)
                 + (nx * nx + ni * ni) * (h_c + d)
                 + nx * ni * d
                 + nx * ni * (2 * h_c + ni) + nx * nx * (h_c + ni)
                 + 2 * nx * ni * h_k + h_k * h_k * (nx + ni) + h_k * ni
                 + nx * ni * n_bag)
    transcendentals = 2 * nx * nx + ni * ni + nx * h_k + nx * n_bag
    bytes_accessed = 4 * (x2d.size + ins2d.size + p_slab.size
                          + nx * n_bag + (n_bag + 1))
    cost = pl.CostEstimate(flops=int(flops),
                           transcendentals=int(transcendentals),
                           bytes_accessed=int(bytes_accessed))

    out = pl.pallas_call(
        kernel,
        out_shape=jax.ShapeDtypeStruct((nx, n_bag), jnp.float32),
        in_specs=[_SMEM, _VMEM, _VMEM, _VMEM],
        out_specs=_VMEM,
        cost_estimate=cost,
    )(ins_idx.astype(jnp.int32), x2d, ins2d, p_slab)
    return out[None]                                                # (1, Nx, n_bag)


# ----------------------------------------------------------------------------
# Parameter init (deterministic, synthetic) + offline slab packing
# ----------------------------------------------------------------------------
def _init_linear(key, n_in, n_out):
    kw, kb = jax.random.split(key)
    bound = n_in ** -0.5
    w = jax.random.uniform(kw, (n_in, n_out), jnp.float32, -bound, bound)
    b = jax.random.uniform(kb, (n_out,), jnp.float32, -bound, bound)
    return w, b


def _init_conv_bn(key, n_in, n_out):
    k1, k2, k3, k4 = jax.random.split(key, 4)
    w, b = _init_linear(k1, n_in, n_out)
    gamma = 1.0 + 0.1 * jax.random.normal(k2, (n_out,), jnp.float32)
    beta = 0.1 * jax.random.normal(k3, (n_out,), jnp.float32)
    r_mean = 0.05 * jax.random.normal(k4, (n_out,), jnp.float32)
    r_var = jnp.ones((n_out,), jnp.float32)
    scale = gamma / jnp.sqrt(r_var + BN_EPS)           # BN eval-mode folded
    shift = beta - r_mean * scale
    return w, b, scale, shift


def init_skip_params(key, d, h_c):
    k1, k2, k3 = jax.random.split(key, 3)
    w1, b1, s1, t1 = _init_conv_bn(k1, d, h_c)
    w2, b2, s2, t2 = _init_conv_bn(k2, d, h_c)
    w3, b3, s3, t3 = _init_conv_bn(k3, d, d)
    return {
        "w": jnp.concatenate([w1, w2, w3], axis=1),                 # (d, 2Hc+d)
        "bst": jnp.stack([jnp.concatenate([b1, b2, b3]),
                          jnp.concatenate([s1, s2, s3]),
                          jnp.concatenate([t1, t2, t3])], axis=0),  # (3, 2Hc+d)
    }


def init_mask_params(key, d, h_k):
    k1, k2, k3, k4 = jax.random.split(key, 4)
    w1, b1 = _init_linear(k1, d, h_k)
    w2, b2 = _init_linear(k2, d, h_k)
    w3, b3 = _init_linear(k3, h_k, d)
    w4, b4 = _init_linear(k4, h_k, 1)
    return {
        "w12": jnp.concatenate([w1, w2], axis=1),                   # (d, 2Hk)
        "b12": jnp.concatenate([b1, b2]).reshape(1, -1),            # (1, 2Hk)
        "w3": w3, "b3": b3.reshape(1, -1),
        "w4": w4, "b4": b4.reshape(1, 1),
    }


def pack_params(params, d, ni, h_c, h_k):
    """Pack all weights / biases / folded-BN constants into ONE lane-dense
    (rows, 128) f32 slab -> a single HBM->VMEM DMA at kernel launch.
    (fc4 bias is intentionally NOT packed: a constant shift cannot change the
    per-bag argmax, so the kernel never needs it.)"""
    lay = _slab_layout(d, ni, h_c, h_k)
    slab = jnp.zeros((lay.rows, lay.lanes), jnp.float32)

    def put(s, r, a):
        return s.at[r:r + a.shape[0], :a.shape[1]].set(a)

    ws12 = jnp.concatenate([params["skip"]["w"], params["skip2"]["w"]], axis=1)
    bst12 = jnp.concatenate([params["skip"]["bst"], params["skip2"]["bst"]], axis=1)
    mk = params["mask"]
    misc = jnp.concatenate([mk["b12"][0], mk["b3"][0], mk["w4"][:, 0]]).reshape(1, -1)

    slab = put(slab, lay.r_ws12, ws12)
    slab = put(slab, lay.r_ws3, params["skip3"]["w"])
    slab = put(slab, lay.r_w12, mk["w12"])
    slab = put(slab, lay.r_w3m, mk["w3"])
    slab = put(slab, lay.r_bst12, bst12)
    slab = put(slab, lay.r_bst3, params["skip3"]["bst"])
    slab = put(slab, lay.r_misc, misc)
    return slab


# ----------------------------------------------------------------------------
# Pure-jnp reference (mirrors the original PyTorch math, no Pallas)
# ----------------------------------------------------------------------------
def _ref_skip(x, p):
    d = x.shape[1]
    w, bst = p["w"], p["bst"]
    hc = (w.shape[1] - d) // 2

    def conv(lo, hi):
        z = x @ w[:, lo:hi] + bst[0, lo:hi]
        return _leaky(z) * bst[1, lo:hi] + bst[2, lo:hi]

    x1, x2, x3 = conv(0, hc), conv(hc, 2 * hc), conv(2 * hc, 2 * hc + d)
    feat = jax.nn.softmax(x1 @ x2.T, axis=0)     # torch Softmax(dim=1) on (1,N,N)
    return feat @ x3 + x


def _ref_mask(x, p):
    hk = p["w12"].shape[1] // 2
    h = x @ p["w12"] + p["b12"][0]
    h1 = _leaky(h[:, :hk])
    h2 = jnp.tanh(h[:, hk:])
    a3 = _leaky((h1.T @ h2) @ p["w3"] + p["b3"][0])
    a4 = (a3.T @ p["w4"] + p["b4"])[:, 0]
    return jax.nn.softmax(a4)


def reference_forward(x, ins_space, ins_idx_list, params):
    x_skip = _ref_skip(x[0], params["skip"])
    ins_skip = _ref_skip(ins_space[0], params["skip2"])
    aa = jnp.sum(x_skip ** 2, axis=1, keepdims=True)
    bb = jnp.sum(ins_skip ** 2, axis=1, keepdims=True)
    aff = jnp.sqrt(jnp.maximum(aa - 2.0 * x_skip @ ins_skip.T + bb.T, 0.0))
    aff_skip = _ref_skip(aff, params["skip3"])
    probs = _ref_mask(aff_skip, params["mask"])
    sel = [int(jnp.argmax(probs[ins_idx_list[i]:ins_idx_list[i + 1]])) + ins_idx_list[i]
           for i in range(len(ins_idx_list) - 1)]
    gathered = aff_skip[:, jnp.array(sel)]
    return jax.nn.softmax(gathered, axis=-1)[None]


# ----------------------------------------------------------------------------
if __name__ == "__main__":
    B, Nx, d = 1, 16, 32          # batch must be 1 (module squeezes dim 0)
    Ni, Hc, Hk = 32, 16, 16       # knowledge-bag instances, args.H_c, args.H_k
    ins_idx = [0, 8, 16, 24, 32]  # bag boundaries -> n_bag = 4

    # The kernel (like the reference module) assumes sorted, non-empty bags.
    assert all(a < b for a, b in zip(ins_idx[:-1], ins_idx[1:])), \
        "ins_idx must be strictly increasing (non-empty bags)"
    assert ins_idx[0] == 0 and ins_idx[-1] == Ni

    key = jax.random.PRNGKey(0)
    kx, ki, k1, k2, k3, k4 = jax.random.split(key, 6)
    x = jax.random.normal(kx, (B, Nx, d), jnp.float32)
    ins_space = jax.random.normal(ki, (1, Ni, d), jnp.float32)

    params = {
        "skip":  init_skip_params(k1, d, Hc),
        "skip2": init_skip_params(k2, d, Hc),
        "skip3": init_skip_params(k3, Ni, Hc),
        "mask":  init_mask_params(k4, Ni, Hk),
    }
    p_slab = pack_params(params, d, Ni, Hc, Hk)       # packed once, offline
    ins_idx_arr = jnp.array(ins_idx, dtype=jnp.int32)

    out = knowledge_bag_fuse_forward(x, ins_space, ins_idx_arr, p_slab,
                                     h_c=Hc, h_k=Hk)
    out = jax.block_until_ready(out)

    ref = reference_forward(x, ins_space, ins_idx, params)

    assert out.shape == (1, Nx, len(ins_idx) - 1), out.shape
    assert bool(jnp.all(jnp.isfinite(out)))
    assert bool(jnp.allclose(out.sum(axis=-1), 1.0, atol=1e-4))
    assert bool(jnp.allclose(out, ref, atol=1e-3, rtol=1e-3)), \
        float(jnp.max(jnp.abs(out - ref)))
    print("KERNEL_OK")
</pallas_src>

<mosaic_0001>
module attributes {stable_mosaic.version = 11 : i64} {
  func.func @kernel(%arg0: memref<5xi32, #tpu.memory_space<smem>>, %arg1: memref<16x32xf32, #tpu.memory_space<vmem>>, %arg2: memref<32x32xf32, #tpu.memory_space<vmem>>, %arg3: memref<136x128xf32, #tpu.memory_space<vmem>>, %arg4: memref<16x4xf32, #tpu.memory_space<vmem>>) attributes {dimension_semantics = [], scalar_prefetch = 0 : i64, scratch_operands = 0 : i64, tpu.core_type = #tpu.core_type<tc>} {
    %c0 = arith.constant 0 : index
    %c0_0 = arith.constant 0 : index
    %0 = vector.load %arg1[%c0, %c0_0] : memref<16x32xf32, #tpu.memory_space<vmem>>, vector<16x32xf32>
    %c0_1 = arith.constant 0 : index
    %c0_2 = arith.constant 0 : index
    %1 = vector.load %arg2[%c0_1, %c0_2] : memref<32x32xf32, #tpu.memory_space<vmem>>, vector<32x32xf32>
    %2 = tpu.concatenate %0, %1 in 0 : vector<16x32xf32>, vector<32x32xf32> -> vector<48x32xf32>
    %c0_3 = arith.constant 0 : index
    %c0_4 = arith.constant 0 : index
    %3 = vector.load %arg3[%c0_3, %c0_4] : memref<136x128xf32, #tpu.memory_space<vmem>>, vector<32x128xf32>
    %c112 = arith.constant 112 : index
    %c0_5 = arith.constant 0 : index
    %4 = vector.load %arg3[%c112, %c0_5] : memref<136x128xf32, #tpu.memory_space<vmem>>, vector<3x128xf32>
    %cst = arith.constant dense<0.000000e+00> : vector<48x128xf32>
    %5 = tpu.matmul %2, %3, %cst {dimension_numbers = #tpu.dot_dimension_numbers<[1], [0], [0], [1], [0, 0, 1, 1], [], []>} : vector<48x32xf32>, vector<32x128xf32>, vector<48x128xf32> -> vector<48x128xf32>
    %6 = vector.extract_strided_slice %4 {offsets = [0, 0], sizes = [1, 128], strides = [1, 1]} : vector<3x128xf32> to vector<1x128xf32>
    %7 = vector.broadcast %6 : vector<1x128xf32> to vector<48x128xf32>
    %8 = arith.addf %5, %7 : vector<48x128xf32>
    %cst_6 = arith.constant 0.00999999977 : f32
    %9 = vector.broadcast %cst_6 : f32 to vector<48x128xf32>
    %10 = arith.mulf %9, %8 : vector<48x128xf32>
    %11 = arith.maximumf %8, %10 : vector<48x128xf32>
    %12 = vector.extract_strided_slice %4 {offsets = [1, 0], sizes = [1, 128], strides = [1, 1]} : vector<3x128xf32> to vector<1x128xf32>
    %13 = vector.broadcast %12 : vector<1x128xf32> to vector<48x128xf32>
    %14 = arith.mulf %11, %13 : vector<48x128xf32>
    %15 = vector.extract_strided_slice %4 {offsets = [2, 0], sizes = [1, 128], strides = [1, 1]} : vector<3x128xf32> to vector<1x128xf32>
    %16 = vector.broadcast %15 : vector<1x128xf32> to vector<48x128xf32>
    %17 = arith.addf %14, %16 : vector<48x128xf32>
    %18 = vector.extract_strided_slice %17 {offsets = [0, 0], sizes = [16, 64], strides = [1, 1]} : vector<48x128xf32> to vector<16x64xf32>
    %19 = vector.extract_strided_slice %18 {offsets = [0, 0], sizes = [16, 16], strides = [1, 1]} : vector<16x64xf32> to vector<16x16xf32>
    %20 = vector.extract_strided_slice %18 {offsets = [0, 16], sizes = [16, 16], strides = [1, 1]} : vector<16x64xf32> to vector<16x16xf32>
    %21 = vector.extract_strided_slice %18 {offsets = [0, 32], sizes = [16, 32], strides = [1, 1]} : vector<16x64xf32> to vector<16x32xf32>
    %cst_7 = arith.constant dense<0.000000e+00> : vector<16x16xf32>
    %22 = tpu.matmul %20, %19, %cst_7 {dimension_numbers = #tpu.dot_dimension_numbers<[1], [1], [0], [0], [0, 0, 1, 0], [], []>} : vector<16x16xf32>, vector<16x16xf32>, vector<16x16xf32> -> vector<16x16xf32>
    %cst_8 = arith.constant dense<0xFF800000> : vector<16xf32>
    %23 = vector.multi_reduction <maximumf>, %22, %cst_8 [1] : vector<16x16xf32> to vector<16xf32>
    %24 = vector.shape_cast %23 : vector<16xf32> to vector<16x1xf32>
    %25 = vector.broadcast %24 : vector<16x1xf32> to vector<16x16xf32>
    %26 = arith.subf %22, %25 : vector<16x16xf32>
    %27 = math.exp %26 : vector<16x16xf32>
    %cst_9 = arith.constant dense<0.000000e+00> : vector<16xf32>
    %28 = vector.multi_reduction <add>, %27, %cst_9 [1] : vector<16x16xf32> to vector<16xf32>
    %29 = vector.shape_cast %28 : vector<16xf32> to vector<16x1xf32>
    %30 = tpu.reciprocal %29 {approx = true} : vector<16x1xf32> -> vector<16x1xf32>
    %31 = arith.mulf %29, %30 : vector<16x1xf32>
    %cst_10 = arith.constant 2.000000e+00 : f32
    %32 = vector.broadcast %cst_10 : f32 to vector<16x1xf32>
    %33 = arith.subf %32, %31 : vector<16x1xf32>
    %34 = arith.mulf %30, %33 : vector<16x1xf32>
    %35 = vector.broadcast %34 : vector<16x1xf32> to vector<16x16xf32>
    %36 = arith.mulf %27, %35 : vector<16x16xf32>
    %cst_11 = arith.constant dense<0.000000e+00> : vector<16x32xf32>
    %37 = tpu.matmul %36, %21, %cst_11 {dimension_numbers = #tpu.dot_dimension_numbers<[0], [0], [1], [1], [0, 1, 1, 1], [], []>} : vector<16x16xf32>, vector<16x32xf32>, vector<16x32xf32> -> vector<16x32xf32>
    %38 = arith.addf %37, %0 : vector<16x32xf32>
    %39 = vector.extract_strided_slice %17 {offsets = [16, 64], sizes = [32, 64], strides = [1, 1]} : vector<48x128xf32> to vector<32x64xf32>
    %40 = vector.extract_strided_slice %39 {offsets = [0, 0], sizes = [32, 16], strides = [1, 1]} : vector<32x64xf32> to vector<32x16xf32>
    %41 = vector.extract_strided_slice %39 {offsets = [0, 16], sizes = [32, 16], strides = [1, 1]} : vector<32x64xf32> to vector<32x16xf32>
    %42 = vector.extract_strided_slice %39 {offsets = [0, 32], sizes = [32, 32], strides = [1, 1]} : vector<32x64xf32> to vector<32x32xf32>
    %cst_12 = arith.constant dense<0.000000e+00> : vector<32x32xf32>
    %43 = tpu.matmul %41, %40, %cst_12 {dimension_numbers = #tpu.dot_dimension_numbers<[1], [1], [0], [0], [0, 0, 1, 0], [], []>} : vector<32x16xf32>, vector<32x16xf32>, vector<32x32xf32> -> vector<32x32xf32>
    %cst_13 = arith.constant dense<0xFF800000> : vector<32xf32>
    %44 = vector.multi_reduction <maximumf>, %43, %cst_13 [1] : vector<32x32xf32> to vector<32xf32>
    %45 = vector.shape_cast %44 : vector<32xf32> to vector<32x1xf32>
    %46 = vector.broadcast %45 : vector<32x1xf32> to vector<32x32xf32>
    %47 = arith.subf %43, %46 : vector<32x32xf32>
    %48 = math.exp %47 : vector<32x32xf32>
    %cst_14 = arith.constant dense<0.000000e+00> : vector<32xf32>
    %49 = vector.multi_reduction <add>, %48, %cst_14 [1] : vector<32x32xf32> to vector<32xf32>
    %50 = vector.shape_cast %49 : vector<32xf32> to vector<32x1xf32>
    %51 = tpu.reciprocal %50 {approx = true} : vector<32x1xf32> -> vector<32x1xf32>
    %52 = arith.mulf %50, %51 : vector<32x1xf32>
    %cst_15 = arith.constant 2.000000e+00 : f32
    %53 = vector.broadcast %cst_15 : f32 to vector<32x1xf32>
    %54 = arith.subf %53, %52 : vector<32x1xf32>
    %55 = arith.mulf %51, %54 : vector<32x1xf32>
    %56 = vector.broadcast %55 : vector<32x1xf32> to vector<32x32xf32>
    %57 = arith.mulf %48, %56 : vector<32x32xf32>
    %cst_16 = arith.constant dense<0.000000e+00> : vector<32x32xf32>
    %58 = tpu.matmul %57, %42, %cst_16 {dimension_numbers = #tpu.dot_dimension_numbers<[0], [0], [1], [1], [0, 1, 1, 1], [], []>} : vector<32x32xf32>, vector<32x32xf32>, vector<32x32xf32> -> vector<32x32xf32>
    %59 = arith.addf %58, %1 : vector<32x32xf32>
    %cst_17 = arith.constant dense<0.000000e+00> : vector<16x32xf32>
    %60 = tpu.matmul %38, %59, %cst_17 {dimension_numbers = #tpu.dot_dimension_numbers<[1], [1], [0], [0], [0, 0, 1, 0], [], []>} : vector<16x32xf32>, vector<32x32xf32>, vector<16x32xf32> -> vector<16x32xf32>
    %61 = arith.mulf %38, %38 : vector<16x32xf32>
    %cst_18 = arith.constant dense<0.000000e+00> : vector<16xf32>
    %62 = vector.multi_reduction <add>, %61, %cst_18 [1] : vector<16x32xf32> to vector<16xf32>
    %63 = vector.shape_cast %62 : vector<16xf32> to vector<16x1xf32>
    %cst_19 = arith.constant 1.000000e+00 : f32
    %64 = vector.broadcast %cst_19 : f32 to vector<1x32xf32>
    %65 = arith.mulf %59, %59 : vector<32x32xf32>
    %cst_20 = arith.constant dense<0.000000e+00> : vector<1x32xf32>
    %66 = tpu.matmul %64, %65, %cst_20 {dimension_numbers = #tpu.dot_dimension_numbers<[1], [1], [0], [0], [0, 0, 1, 0], [], []>} : vector<1x32xf32>, vector<32x32xf32>, vector<1x32xf32> -> vector<1x32xf32>
    %cst_21 = arith.constant 2.000000e+00 : f32
    %67 = vector.broadcast %cst_21 : f32 to vector<16x32xf32>
    %68 = arith.mulf %67, %60 : vector<16x32xf32>
    %69 = vector.broadcast %63 : vector<16x1xf32> to vector<16x32xf32>
    %70 = arith.subf %69, %68 : vector<16x32xf32>
    %71 = vector.broadcast %66 : vector<1x32xf32> to vector<16x32xf32>
    %72 = arith.addf %70, %71 : vector<16x32xf32>
    %cst_22 = arith.constant 0.000000e+00 : f32
    %73 = vector.broadcast %cst_22 : f32 to vector<16x32xf32>
    %74 = arith.maximumf %72, %73 : vector<16x32xf32>
    %75 = math.sqrt %74 : vector<16x32xf32>
    %c32 = arith.constant 32 : index
    %c0_23 = arith.constant 0 : index
    %76 = vector.load %arg3[%c32, %c0_23] : memref<136x128xf32, #tpu.memory_space<vmem>>, vector<32x64xf32>
    %c120 = arith.constant 120 : index
    %c0_24 = arith.constant 0 : index
    %77 = vector.load %arg3[%c120, %c0_24] : memref<136x128xf32, #tpu.memory_space<vmem>>, vector<3x64xf32>
    %cst_25 = arith.constant dense<0.000000e+00> : vector<16x64xf32>
    %78 = tpu.matmul %75, %76, %cst_25 {dimension_numbers = #tpu.dot_dimension_numbers<[1], [0], [0], [1], [0, 0, 1, 1], [], []>} : vector<16x32xf32>, vector<32x64xf32>, vector<16x64xf32> -> vector<16x64xf32>
    %79 = vector.extract_strided_slice %77 {offsets = [0, 0], sizes = [1, 64], strides = [1, 1]} : vector<3x64xf32> to vector<1x64xf32>
    %80 = vector.broadcast %79 : vector<1x64xf32> to vector<16x64xf32>
    %81 = arith.addf %78, %80 : vector<16x64xf32>
    %cst_26 = arith.constant 0.00999999977 : f32
    %82 = vector.broadcast %cst_26 : f32 to vector<16x64xf32>
    %83 = arith.mulf %82, %81 : vector<16x64xf32>
    %84 = arith.maximumf %81, %83 : vector<16x64xf32>
    %85 = vector.extract_strided_slice %77 {offsets = [1, 0], sizes = [1, 64], strides = [1, 1]} : vector<3x64xf32> to vector<1x64xf32>
    %86 = vector.broadcast %85 : vector<1x64xf32> to vector<16x64xf32>
    %87 = arith.mulf %84, %86 : vector<16x64xf32>
    %88 = vector.extract_strided_slice %77 {offsets = [2, 0], sizes = [1, 64], strides = [1, 1]} : vector<3x64xf32> to vector<1x64xf32>
    %89 = vector.broadcast %88 : vector<1x64xf32> to vector<16x64xf32>
    %90 = arith.addf %87, %89 : vector<16x64xf32>
    %91 = vector.extract_strided_slice %90 {offsets = [0, 0], sizes = [16, 16], strides = [1, 1]} : vector<16x64xf32> to vector<16x16xf32>
    %92 = vector.extract_strided_slice %90 {offsets = [0, 16], sizes = [16, 16], strides = [1, 1]} : vector<16x64xf32> to vector<16x16xf32>
    %93 = vector.extract_strided_slice %90 {offsets = [0, 32], sizes = [16, 32], strides = [1, 1]} : vector<16x64xf32> to vector<16x32xf32>
    %cst_27 = arith.constant dense<0.000000e+00> : vector<16x16xf32>
    %94 = tpu.matmul %92, %91, %cst_27 {dimension_numbers = #tpu.dot_dimension_numbers<[1], [1], [0], [0], [0, 0, 1, 0], [], []>} : vector<16x16xf32>, vector<16x16xf32>, vector<16x16xf32> -> vector<16x16xf32>
    %cst_28 = arith.constant dense<0xFF800000> : vector<16xf32>
    %95 = vector.multi_reduction <maximumf>, %94, %cst_28 [1] : vector<16x16xf32> to vector<16xf32>
    %96 = vector.shape_cast %95 : vector<16xf32> to vector<16x1xf32>
    %97 = vector.broadcast %96 : vector<16x1xf32> to vector<16x16xf32>
    %98 = arith.subf %94, %97 : vector<16x16xf32>
    %99 = math.exp %98 : vector<16x16xf32>
    %cst_29 = arith.constant dense<0.000000e+00> : vector<16xf32>
    %100 = vector.multi_reduction <add>, %99, %cst_29 [1] : vector<16x16xf32> to vector<16xf32>
    %101 = vector.shape_cast %100 : vector<16xf32> to vector<16x1xf32>
    %102 = tpu.reciprocal %101 {approx = true} : vector<16x1xf32> -> vector<16x1xf32>
    %103 = arith.mulf %101, %102 : vector<16x1xf32>
    %cst_30 = arith.constant 2.000000e+00 : f32
    %104 = vector.broadcast %cst_30 : f32 to vector<16x1xf32>
    %105 = arith.subf %104, %103 : vector<16x1xf32>
    %106 = arith.mulf %102, %105 : vector<16x1xf32>
    %107 = vector.broadcast %106 : vector<16x1xf32> to vector<16x16xf32>
    %108 = arith.mulf %99, %107 : vector<16x16xf32>
    %cst_31 = arith.constant dense<0.000000e+00> : vector<16x32xf32>
    %109 = tpu.matmul %108, %93, %cst_31 {dimension_numbers = #tpu.dot_dimension_numbers<[0], [0], [1], [1], [0, 1, 1, 1], [], []>} : vector<16x16xf32>, vector<16x32xf32>, vector<16x32xf32> -> vector<16x32xf32>
    %110 = arith.addf %109, %75 : vector<16x32xf32>
    %c64 = arith.constant 64 : index
    %c0_32 = arith.constant 0 : index
    %111 = vector.load %arg3[%c64, %c0_32] : memref<136x128xf32, #tpu.memory_space<vmem>>, vector<32x32xf32>
    %c128 = arith.constant 128 : index
    %c0_33 = arith.constant 0 : index
    %112 = vector.load %arg3[%c128, %c0_33] : memref<136x128xf32, #tpu.memory_space<vmem>>, vector<1x32xf32>
    %cst_34 = arith.constant dense<0.000000e+00> : vector<16x32xf32>
    %113 = tpu.matmul %110, %111, %cst_34 {dimension_numbers = #tpu.dot_dimension_numbers<[1], [0], [0], [1], [0, 0, 1, 1], [], []>} : vector<16x32xf32>, vector<32x32xf32>, vector<16x32xf32> -> vector<16x32xf32>
    %114 = vector.broadcast %112 : vector<1x32xf32> to vector<16x32xf32>
    %115 = arith.addf %113, %114 : vector<16x32xf32>
    %116 = vector.extract_strided_slice %115 {offsets = [0, 0], sizes = [16, 16], strides = [1, 1]} : vector<16x32xf32> to vector<16x16xf32>
    %cst_35 = arith.constant 0.00999999977 : f32
    %117 = vector.broadcast %cst_35 : f32 to vector<16x16xf32>
    %118 = arith.mulf %117, %116 : vector<16x16xf32>
    %119 = arith.maximumf %116, %118 : vector<16x16xf32>
    %120 = vector.extract_strided_slice %115 {offsets = [0, 16], sizes = [16, 16], strides = [1, 1]} : vector<16x32xf32> to vector<16x16xf32>
    %121 = math.tanh %120 : vector<16x16xf32>
    %cst_36 = arith.constant dense<0.000000e+00> : vector<16x16xf32>
    %122 = tpu.matmul %119, %121, %cst_36 {dimension_numbers = #tpu.dot_dimension_numbers<[0], [0], [1], [1], [0, 1, 1, 1], [], []>} : vector<16x16xf32>, vector<16x16xf32>, vector<16x16xf32> -> vector<16x16xf32>
    %c96 = arith.constant 96 : index
    %c0_37 = arith.constant 0 : index
    %123 = vector.load %arg3[%c96, %c0_37] : memref<136x128xf32, #tpu.memory_space<vmem>>, vector<16x32xf32>
    %c128_38 = arith.constant 128 : index
    %c32_39 = arith.constant 32 : index
    %124 = vector.load %arg3[%c128_38, %c32_39] : memref<136x128xf32, #tpu.memory_space<vmem>>, vector<1x32xf32>
    %cst_40 = arith.constant dense<0.000000e+00> : vector<16x32xf32>
    %125 = tpu.matmul %122, %123, %cst_40 {dimension_numbers = #tpu.dot_dimension_numbers<[1], [0], [0], [1], [0, 0, 1, 1], [], []>} : vector<16x16xf32>, vector<16x32xf32>, vector<16x32xf32> -> vector<16x32xf32>
    %126 = vector.broadcast %124 : vector<1x32xf32> to vector<16x32xf32>
    %127 = arith.addf %125, %126 : vector<16x32xf32>
    %cst_41 = arith.constant 0.00999999977 : f32
    %128 = vector.broadcast %cst_41 : f32 to vector<16x32xf32>
    %129 = arith.mulf %128, %127 : vector<16x32xf32>
    %130 = arith.maximumf %127, %129 : vector<16x32xf32>
    %c128_42 = arith.constant 128 : index
    %c64_43 = arith.constant 64 : index
    %131 = vector.load %arg3[%c128_42, %c64_43] : memref<136x128xf32, #tpu.memory_space<vmem>>, vector<1x16xf32>
    %cst_44 = arith.constant dense<0.000000e+00> : vector<1x32xf32>
    %132 = tpu.matmul %131, %130, %cst_44 {dimension_numbers = #tpu.dot_dimension_numbers<[1], [0], [0], [1], [0, 0, 1, 1], [], []>} : vector<1x16xf32>, vector<16x32xf32>, vector<1x32xf32> -> vector<1x32xf32>
    %133 = tpu.iota {dimensions = array<i32: 1>} : vector<1x32xi32>
    %c0_i32 = arith.constant 0 : i32
    %134 = vector.broadcast %c0_i32 : i32 to vector<1x32xi32>
    %c1 = arith.constant 1 : index
    %135 = memref.load %arg0[%c1] : memref<5xi32, #tpu.memory_space<smem>>
    %136 = vector.broadcast %135 : i32 to vector<1x32xi32>
    %137 = arith.cmpi sge, %133, %136 : vector<1x32xi32>
    %138 = arith.extui %137 : vector<1x32xi1> to vector<1x32xi32>
    %139 = arith.addi %134, %138 : vector<1x32xi32>
    %c2 = arith.constant 2 : index
    %140 = memref.load %arg0[%c2] : memref<5xi32, #tpu.memory_space<smem>>
    %141 = vector.broadcast %140 : i32 to vector<1x32xi32>
    %142 = arith.cmpi sge, %133, %141 : vector<1x32xi32>
    %143 = arith.extui %142 : vector<1x32xi1> to vector<1x32xi32>
    %144 = arith.addi %139, %143 : vector<1x32xi32>
    %c3 = arith.constant 3 : index
    %145 = memref.load %arg0[%c3] : memref<5xi32, #tpu.memory_space<smem>>
    %146 = vector.broadcast %145 : i32 to vector<1x32xi32>
    %147 = arith.cmpi sge, %133, %146 : vector<1x32xi32>
    %148 = arith.extui %147 : vector<1x32xi1> to vector<1x32xi32>
    %149 = arith.addi %144, %148 : vector<1x32xi32>
    %c0_45 = arith.constant 0 : index
    %150 = memref.load %arg0[%c0_45] : memref<5xi32, #tpu.memory_space<smem>>
    %151 = vector.broadcast %150 : i32 to vector<1x32xi32>
    %152 = arith.cmpi sge, %133, %151 : vector<1x32xi32>
    %c4 = arith.constant 4 : index
    %153 = memref.load %arg0[%c4] : memref<5xi32, #tpu.memory_space<smem>>
    %154 = vector.broadcast %153 : i32 to vector<1x32xi32>
    %155 = arith.cmpi slt, %133, %154 : vector<1x32xi32>
    %156 = arith.andi %152, %155 : vector<1x32xi1>
    %157 = tpu.iota {dimensions = array<i32: 0>} : vector<4x32xi32>
    %158 = vector.broadcast %149 : vector<1x32xi32> to vector<4x32xi32>
    %159 = arith.cmpi eq, %157, %158 : vector<4x32xi32>
    %160 = vector.broadcast %156 : vector<1x32xi1> to vector<4x32xi1>
    %161 = arith.andi %159, %160 : vector<4x32xi1>
    %cst_46 = arith.constant -1.000000e+30 : f32
    %162 = vector.shape_cast %132 : vector<1x32xf32> to vector<1x32xf32>
    %163 = vector.broadcast %162 : vector<1x32xf32> to vector<4x32xf32>
    %164 = vector.broadcast %cst_46 : f32 to vector<4x32xf32>
    %165 = arith.select %161, %163, %164 : vector<4x32xi1>, vector<4x32xf32>
    %cst_47 = arith.constant dense<0xFF800000> : vector<4xf32>
    %166 = vector.multi_reduction <maximumf>, %165, %cst_47 [1] : vector<4x32xf32> to vector<4xf32>
    %167 = vector.shape_cast %166 : vector<4xf32> to vector<4x1xf32>
    %168 = vector.broadcast %132 : vector<1x32xf32> to vector<4x32xf32>
    %169 = vector.broadcast %167 : vector<4x1xf32> to vector<4x32xf32>
    %170 = arith.cmpf oeq, %168, %169 : vector<4x32xf32>
    %171 = arith.andi %161, %170 : vector<4x32xi1>
    %c32_i32 = arith.constant 32 : i32
    %172 = vector.shape_cast %133 : vector<1x32xi32> to vector<1x32xi32>
    %173 = vector.broadcast %172 : vector<1x32xi32> to vector<4x32xi32>
    %174 = vector.broadcast %c32_i32 : i32 to vector<4x32xi32>
    %175 = arith.select %171, %173, %174 : vector<4x32xi1>, vector<4x32xi32>
    %cst_48 = arith.constant dense<2147483647> : vector<4xi32>
    %176 = vector.multi_reduction <minsi>, %175, %cst_48 [1] : vector<4x32xi32> to vector<4xi32>
    %177 = vector.shape_cast %176 : vector<4xi32> to vector<4x1xi32>
    %178 = vector.broadcast %133 : vector<1x32xi32> to vector<4x32xi32>
    %179 = vector.broadcast %177 : vector<4x1xi32> to vector<4x32xi32>
    %180 = arith.cmpi eq, %178, %179 : vector<4x32xi32>
    %181 = arith.extui %180 : vector<4x32xi1> to vector<4x32xi32>
    %182 = arith.sitofp %181 : vector<4x32xi32> to vector<4x32xf32>
    %cst_49 = arith.constant dense<0.000000e+00> : vector<16x4xf32>
    %183 = tpu.matmul %110, %182, %cst_49 {dimension_numbers = #tpu.dot_dimension_numbers<[1], [1], [0], [0], [0, 0, 1, 0], [], []>} : vector<16x32xf32>, vector<4x32xf32>, vector<16x4xf32> -> vector<16x4xf32>
    %cst_50 = arith.constant dense<0xFF800000> : vector<16xf32>
    %184 = vector.multi_reduction <maximumf>, %183, %cst_50 [1] : vector<16x4xf32> to vector<16xf32>
    %185 = vector.shape_cast %184 : vector<16xf32> to vector<16x1xf32>
    %186 = vector.broadcast %185 : vector<16x1xf32> to vector<16x4xf32>
    %187 = arith.subf %183, %186 : vector<16x4xf32>
    %188 = math.exp %187 : vector<16x4xf32>
    %cst_51 = arith.constant dense<0.000000e+00> : vector<16xf32>
    %189 = vector.multi_reduction <add>, %188, %cst_51 [1] : vector<16x4xf32> to vector<16xf32>
    %190 = vector.shape_cast %189 : vector<16xf32> to vector<16x1xf32>
    %191 = tpu.reciprocal %190 {approx = true} : vector<16x1xf32> -> vector<16x1xf32>
    %192 = arith.mulf %190, %191 : vector<16x1xf32>
    %cst_52 = arith.constant 2.000000e+00 : f32
    %193 = vector.broadcast %cst_52 : f32 to vector<16x1xf32>
    %194 = arith.subf %193, %192 : vector<16x1xf32>
    %195 = arith.mulf %191, %194 : vector<16x1xf32>
    %196 = vector.broadcast %195 : vector<16x1xf32> to vector<16x4xf32>
    %197 = arith.mulf %188, %196 : vector<16x4xf32>
    %c0_53 = arith.constant 0 : index
    %c0_54 = arith.constant 0 : index
    %198 = vector.load %arg4[%c0_53, %c0_54] : memref<16x4xf32, #tpu.memory_space<vmem>>, vector<16x4xf32>
    tpu.vector_store %arg4[%c0_53, %c0_54], %197 {strides = array<i32>} : memref<16x4xf32, #tpu.memory_space<vmem>>, vector<16x4xf32>,
    return
  }
}

</mosaic_0001>

<llo_original>
// kernel: knowledge_bag_fuse_forward.1
$region0: #{knowledge_bag_fuse_forward.1}
  #allocation0 [shape = 'u32[]', space=smem, size = 0x4, offset = 0x4, fixed_abs, tag = 'smem constant byte address 0x4 - core index']
  #allocation1 [shape = 'u32[72,128]{1,0:T(1,128)}', space=vmem, size = 0x9000, scoped, tag = 'internal scratch']
  %s0 = inlined_call_operand.vmem [shape: s32[5], index: 0, kind: input, shape index: {}]
  %s1 = inlined_call_operand.hbm [shape: f32[16,32], index: 1, kind: input, shape index: {}]
  %s2 = inlined_call_operand.hbm [shape: f32[32,32], index: 2, kind: input, shape index: {}]
  %s3 = inlined_call_operand.hbm [shape: f32[136,128], index: 3, kind: input, shape index: {}]
  %s4 = inlined_call_operand.vmem [shape: f32[16,4], index: 4, kind: output, shape index: {}]
  %s5 = sld [smem:[#allocation0]]
  $region42: #{knowledge_bag_fuse_forward.1} parent=0
    _
  %s7 = ssub.s32 1, %s5
  %s8 = scalar_select 0, %s7, %s5
  $region1: #{knowledge_bag_fuse_forward.1} parent=0
    #allocation2 [shape = 'u8[512]{0}', space=smem, size = 0x200, scoped, tag = 'input window, operand 0, single buffered']
    #allocation3 [shape = 's32[1]{0}', space=sflag, size = 0x4, scoped, tag = 'scoped memory for knowledge_bag_fuse_forward.1']
    #allocation4 [shape = 's32[1]{0}', space=sflag, size = 0x4, scoped, tag = 'scoped memory for knowledge_bag_fuse_forward.1']
    #allocation5 [shape = 'u8[8192]{0}', space=vmem, size = 0x2000, scoped, tag = 'input window, operand 1, single buffered']
    #allocation6 [shape = 'u8[16384]{0}', space=vmem, size = 0x4000, scoped, tag = 'input window, operand 2, single buffered']
    #allocation7 [shape = 's32[1]{0}', space=sflag, size = 0x4, scoped, tag = 'scoped memory for knowledge_bag_fuse_forward.1']
    #allocation8 [shape = 'u8[69632]{0}', space=vmem, size = 0x11000, scoped, tag = 'input window, operand 3, single buffered']
    %9 = vsyncpa [#allocation4], 0
    %10 = vsyncpa [#allocation3], 0
    %11 = vsyncpa [#allocation7], 0
    // Predicated region
    $region2: #{knowledge_bag_fuse_forward.1} parent=1 // pred_check
      _
    $region3: #{knowledge_bag_fuse_forward.1} parent=1 // pred_check_branch
      %13 = sbr.rel (0) target = $region5
    $region4: #{knowledge_bag_fuse_forward.1} parent=1 // pred_region
      %15 = vsyncadd [#allocation4], 0
      %s17 = sshll.u32 %s0, 4
      %s18 = int_to_ptr.vmem [resolvable:$true] %s17
      %20 = dma.vmem_to_smem %s18, 16, [#allocation2], [#allocation4]
    $region5: #{knowledge_bag_fuse_forward.1} parent=1 // pred_fallthru
      _
    // Predicated region
    $region6: #{knowledge_bag_fuse_forward.1} parent=1 // pred_check
      _
    $region7: #{knowledge_bag_fuse_forward.1} parent=1 // pred_check_branch
      %22 = sbr.rel (0) target = $region9
    $region8: #{knowledge_bag_fuse_forward.1} parent=1 // pred_region
      %24 = vsyncadd [#allocation3], 0
      %s25 = sshll.u32 %s1, 4
      %s26 = int_to_ptr.hbm [resolvable:$true] %s25
      %s27 = sshll.u32 [#allocation5], 4
      %s28 = int_to_ptr.vmem [resolvable:$true] %s27
      %33 = dma.hbm_to_vmem [thread:$0]  %s26, 256, %s28, [#allocation3], 128, 128, 8
    $region9: #{knowledge_bag_fuse_forward.1} parent=1 // pred_fallthru
      _
    // Predicated region
    $region10: #{knowledge_bag_fuse_forward.1} parent=1 // pred_check
      _
    $region11: #{knowledge_bag_fuse_forward.1} parent=1 // pred_check_branch
      %35 = sbr.rel (0) target = $region13
    $region12: #{knowledge_bag_fuse_forward.1} parent=1 // pred_region
      %37 = vsyncadd [#allocation7], 0
      %s38 = sshll.u32 %s2, 4
      %s39 = int_to_ptr.hbm [resolvable:$true] %s38
      %s40 = sshll.u32 [#allocation6], 4
      %s41 = int_to_ptr.vmem [resolvable:$true] %s40
      %46 = dma.hbm_to_vmem [thread:$0]  %s39, 512, %s41, [#allocation7], 128, 128, 8
    $region13: #{knowledge_bag_fuse_forward.1} parent=1 // pred_fallthru
      _
    // Predicated region
    $region14: #{knowledge_bag_fuse_forward.1} parent=1 // pred_check
      _
    $region15: #{knowledge_bag_fuse_forward.1} parent=1 // pred_check_branch
      %48 = sbr.rel (0) target = $region17
    $region16: #{knowledge_bag_fuse_forward.1} parent=1 // pred_region
      %50 = vsyncadd [#allocation7], 0
      %s51 = sshll.u32 %s3, 4
      %s52 = int_to_ptr.hbm [resolvable:$true] %s51
      %s53 = sshll.u32 [#allocation8], 4
      %s54 = int_to_ptr.vmem [resolvable:$true] %s53
      %59 = dma.hbm_to_vmem [thread:$0]  %s52, 2176, %s54, [#allocation7], 128, 128, 8
    $region17: #{knowledge_bag_fuse_forward.1} parent=1 // pred_fallthru
      _
    // Predicated region
    $region18: #{knowledge_bag_fuse_forward.1} parent=1 // pred_check
      _
    $region19: #{knowledge_bag_fuse_forward.1} parent=1 // pred_check_branch
      %61 = sbr.rel (0) target = $region21
    $region20: #{knowledge_bag_fuse_forward.1} parent=1 // pred_region
      %63 = dma.done [#allocation4], 16
    $region21: #{knowledge_bag_fuse_forward.1} parent=1 // pred_fallthru
      _
    // Predicated region
    $region22: #{knowledge_bag_fuse_forward.1} parent=1 // pred_check
      _
    $region23: #{knowledge_bag_fuse_forward.1} parent=1 // pred_check_branch
      %65 = sbr.rel (0) target = $region25
    $region24: #{knowledge_bag_fuse_forward.1} parent=1 // pred_region
      %67 = dma.done [#allocation3], 256
    $region25: #{knowledge_bag_fuse_forward.1} parent=1 // pred_fallthru
      _
    // Predicated region
    $region26: #{knowledge_bag_fuse_forward.1} parent=1 // pred_check
      _
    $region27: #{knowledge_bag_fuse_forward.1} parent=1 // pred_check_branch
      %69 = sbr.rel (0) target = $region29
    $region28: #{knowledge_bag_fuse_forward.1} parent=1 // pred_region
      %71 = dma.done [#allocation7], 512
    $region29: #{knowledge_bag_fuse_forward.1} parent=1 // pred_fallthru
      _
    // Predicated region
    $region30: #{knowledge_bag_fuse_forward.1} parent=1 // pred_check
      _
    $region31: #{knowledge_bag_fuse_forward.1} parent=1 // pred_check_branch
      %73 = sbr.rel (0) target = $region33
    $region32: #{knowledge_bag_fuse_forward.1} parent=1 // pred_region
      %75 = dma.done [#allocation7], 2176
    $region33: #{knowledge_bag_fuse_forward.1} parent=1 // pred_fallthru
      _
    %76 = sfence
    %v77 = vld [vmem:[#allocation5] sm:$0xff]
    %v78 = vld [vmem:[#allocation5 + $0x8] sm:$0xff]
    %v79 = vld [vmem:[#allocation6] sm:$0xff]
    %v80 = vld [vmem:[#allocation6 + $0x8] sm:$0xff]
    %v81 = vld [vmem:[#allocation6 + $0x10] sm:$0xff]
    %v82 = vld [vmem:[#allocation6 + $0x18] sm:$0xff]
    %v83 = vld [vmem:[#allocation8] sm:$0xff]
    %v84 = vld [vmem:[#allocation8 + $0x8] sm:$0xff]
    %v85 = vld [vmem:[#allocation8 + $0x10] sm:$0xff]
    %v86 = vld [vmem:[#allocation8 + $0x18] sm:$0xff]
    %v87 = vld [vmem:[#allocation8 + $0x70] sm:$0x7]
    %v88 = vperm.slane %v87, 0
    %vm89 = vcmask 261120
    %v91 = vsel %vm89, %v77, 0
    %v94 = vsel %vm89, %v78, 0
    %v97 = vsel %vm89, %v79, 0
    %v100 = vsel %vm89, %v80, 0
    %v103 = vsel %vm89, %v81, 0
    %v106 = vsel %vm89, %v82, 0
    %108 = vmatpush.msra.mxu0 0.0
    %109 = vmatpush.msra.mxu0 0.0
    %110 = vmatpush.msra.mxu0 0.0
    %111 = vmatpush.msra.mxu0 0.0
    %112 = vmatpush.msra.mxu0 0.0
    %113 = vmatpush.msra.mxu0 0.0
    %114 = vmatpush.msra.mxu0 0.0
    %115 = vmatpush.msra.mxu0 0.0
    %116 = vmatpush.msra.mxu0 0.0
    %117 = vmatpush.msra.mxu0 0.0
    %118 = vmatpush.msra.mxu0 0.0
    %119 = vmatpush.msra.mxu0 0.0
    %120 = vmatpush.msra.mxu0 %v86
    %121 = vmatpush.msra.mxu0 %v85
    %122 = vmatpush.msra.mxu0 %v84
    %123 = vmatpush.msra.mxu0 %v83
    %124 = vmatmul.f32.gmra.mxu0 %v91
    %v125 = vpop.f32.mrf.mxu0
    %v126 = vadd.f32 %v88, %v125
    %127 = vmatmul.f32.gmra.mxu0 %v94
    %v128 = vpop.f32.mrf.mxu0
    %v129 = vadd.f32 %v88, %v128
    %130 = vmatmul.f32.gmra.mxu0 %v97
    %v131 = vpop.f32.mrf.mxu0
    %v132 = vadd.f32 %v88, %v131
    %133 = vmatmul.f32.gmra.mxu0 %v100
    %v134 = vpop.f32.mrf.mxu0
    %v135 = vadd.f32 %v88, %v134
    %136 = vmatmul.f32.gmra.mxu0 %v103
    %v137 = vpop.f32.mrf.mxu0
    %v138 = vadd.f32 %v88, %v137
    %139 = vmatmul.f32.gmra.mxu0 %v106
    %v140 = vpop.f32.mrf.mxu0
    %v141 = vadd.f32 %v88, %v140
    %142 = vdwg.mxu0
    %v143 = vmul.f32 %v126, 0.01
    %v144 = vmul.f32 %v129, 0.01
    %v145 = vmul.f32 %v132, 0.01
    %v146 = vmul.f32 %v135, 0.01
    %v147 = vmul.f32 %v138, 0.01
    %v148 = vmul.f32 %v141, 0.01
    %v149 = vmax.f32 %v126, %v143
    %v150 = vmax.f32 %v129, %v144
    %v151 = vmax.f32 %v132, %v145
    %v152 = vmax.f32 %v135, %v146
    %v153 = vmax.f32 %v138, %v147
    %v154 = vmax.f32 %v141, %v148
    %v155 = vperm.slane %v87, 1
    %v156 = vmul.f32 %v149, %v155
    %v157 = vmul.f32 %v150, %v155
    %v158 = vmul.f32 %v151, %v155
    %v159 = vmul.f32 %v152, %v155
    %v160 = vmul.f32 %v153, %v155
    %v161 = vmul.f32 %v154, %v155
    %v162 = vperm.slane %v87, 2
    %v163 = vadd.f32 %v156, %v162
    %v164 = vadd.f32 %v157, %v162
    %v165 = vadd.f32 %v158, %v162
    %v166 = vadd.f32 %v159, %v162
    %v167 = vadd.f32 %v160, %v162
    %v168 = vadd.f32 %v161, %v162
    %171 = vrot.lane.b32.xlu0 %v163, 112
    %v172 = vpop.permute.xlu0 %171
    %173 = vrot.lane.b32.xlu0 %v164, 112
    %v174 = vpop.permute.xlu0 %173
    %vm175 = vcmask 130048
    %v176 = vsel %vm175, %v172, 0
    %v178 = vsel %vm175, %v174, 0
    %v180 = vsel %vm175, %v163, 0
    %v182 = vsel %vm175, %v164, 0
    %184 = vmatpush.xpose.msra.mxu0 0.0
    %185 = vmatpush.xpose.msra.mxu0 0.0
    %186 = vmatpush.xpose.msra.mxu0 0.0
    %187 = vmatpush.xpose.msra.mxu0 0.0
    %188 = vmatpush.xpose.msra.mxu0 0.0
    %189 = vmatpush.xpose.msra.mxu0 0.0
    %190 = vmatpush.xpose.msra.mxu0 0.0
    %191 = vmatpush.xpose.msra.mxu0 0.0
    %192 = vmatpush.xpose.msra.mxu0 0.0
    %193 = vmatpush.xpose.msra.mxu0 0.0
    %194 = vmatpush.xpose.msra.mxu0 0.0
    %195 = vmatpush.xpose.msra.mxu0 0.0
    %196 = vmatpush.xpose.msra.mxu0 0.0
    %197 = vmatpush.xpose.msra.mxu0 0.0
    %198 = vmatpush.xpose.msra.mxu0 %v182
    %199 = vmatpush.xpose.msra.mxu0 %v180
    %200 = vmatmul.f32.gmra.mxu0 %v176
    %v201 = vpop.f32.mrf.mxu0
    %v202 = vadd.f32 0.0, %v201
    %203 = vmatmul.f32.gmra.mxu0 %v178
    %v204 = vpop.f32.mrf.mxu0
    %v205 = vadd.f32 0.0, %v204
    %206 = vdwg.mxu0
    %v207 = vsel %vm175, %v202, -inf
    %208 = vmax.xlane.f32.xlu0 %v207
    %v209 = vpop.xlane.xlu0 %208
    %v210 = vsel %vm175, %v205, -inf
    %211 = vmax.xlane.f32.xlu0 %v210
    %v212 = vpop.xlane.xlu0 %211
    %v213 = vsub.f32 %v202, %v209
    %v214 = vsub.f32 %v205, %v212
    %v215 = vmul.f32 %v213, 1.442695
    %v216 = vpow.pop %v215
    %v217 = vmul.f32 %v214, 1.442695
    %v218 = vpow.pop %v217
    %v219 = vsel %vm175, %v216, 0.0
    %220 = vadd.xlane.f32.xlu0 %v219
    %v221 = vpop.xlane.xlu0 %220
    %v222 = vsel %vm175, %v218, 0.0
    %223 = vadd.xlane.f32.xlu0 %v222
    %v224 = vpop.xlane.xlu0 %223
    %v225 = vrcp.pop %v221
    %v226 = vrcp.pop %v224
    %v227 = vmul.f32 %v221, %v225
    %v228 = vmul.f32 %v224, %v226
    %v229 = vsub.f32 2.0, %v227
    %v230 = vsub.f32 2.0, %v228
    %v231 = vmul.f32 %v225, %v229
    %v232 = vmul.f32 %v226, %v230
    %v233 = vmul.f32 %v216, %v231
    %v234 = vmul.f32 %v218, %v232
    %235 = vxpose.xlu0.b32.start [1/16] %v233, 128
    %236 = vxpose.xlu0.b32.cont [2/16] %v234, 128
    %237 = vxpose.xlu0.b32.cont [3/16] 0.0, 128
    %238 = vxpose.xlu0.b32.cont [4/16] 0.0, 128
    %239 = vxpose.xlu0.b32.cont [5/16] 0.0, 128
    %240 = vxpose.xlu0.b32.cont [6/16] 0.0, 128
    %241 = vxpose.xlu0.b32.cont [7/16] 0.0, 128
    %242 = vxpose.xlu0.b32.cont [8/16] 0.0, 128
    %243 = vxpose.xlu0.b32.cont [9/16] 0.0, 128
    %244 = vxpose.xlu0.b32.cont [10/16] 0.0, 128
    %245 = vxpose.xlu0.b32.cont [11/16] 0.0, 128
    %246 = vxpose.xlu0.b32.cont [12/16] 0.0, 128
    %247 = vxpose.xlu0.b32.cont [13/16] 0.0, 128
    %248 = vxpose.xlu0.b32.cont [14/16] 0.0, 128
    %249 = vxpose.xlu0.b32.cont [15/16] 0.0, 128
    %250 = vxpose.xlu0.b32.end [16/16] 0.0, 128
    %v251 = vpop.trf.xlu0
    %v252 = vpop.trf.xlu0
    %v253 = vpop.trf.xlu0
    %v254 = vpop.trf.xlu0
    %v255 = vpop.trf.xlu0
    %v256 = vpop.trf.xlu0
    %v257 = vpop.trf.xlu0
    %v258 = vpop.trf.xlu0
    %v259 = vpop.trf.xlu0
    %v260 = vpop.trf.xlu0
    %v261 = vpop.trf.xlu0
    %v262 = vpop.trf.xlu0
    %v263 = vpop.trf.xlu0
    %v264 = vpop.trf.xlu0
    %v265 = vpop.trf.xlu0
    %v266 = vpop.trf.xlu0
    %267 = vrot.lane.b32.xlu0 %v163, 96
    %v268 = vpop.permute.xlu0 %267
    %269 = vrot.lane.b32.xlu0 %v164, 96
    %v270 = vpop.permute.xlu0 %269
    %v274 = vsel %vm175, %v251, 0
    %v277 = vsel %vm175, %v252, 0
    %279 = vmatpush.msra.mxu0 0.0
    %280 = vmatpush.msra.mxu0 0.0
    %281 = vmatpush.msra.mxu0 0.0
    %282 = vmatpush.msra.mxu0 0.0
    %283 = vmatpush.msra.mxu0 0.0
    %284 = vmatpush.msra.mxu0 0.0
    %285 = vmatpush.msra.mxu0 0.0
    %286 = vmatpush.msra.mxu0 0.0
    %287 = vmatpush.msra.mxu0 0.0
    %288 = vmatpush.msra.mxu0 0.0
    %289 = vmatpush.msra.mxu0 0.0
    %290 = vmatpush.msra.mxu0 0.0
    %291 = vmatpush.msra.mxu0 0.0
    %292 = vmatpush.msra.mxu0 0.0
    %293 = vmatpush.msra.mxu0 %v270
    %294 = vmatpush.msra.mxu0 %v268
    %295 = vmatmul.f32.gmra.mxu0 %v274
    %v296 = vpop.f32.mrf.mxu0
    %v297 = vadd.f32 %v77, %v296
    %298 = vmatmul.f32.gmra.mxu0 %v277
    %v299 = vpop.f32.mrf.mxu0
    %v300 = vadd.f32 %v78, %v299
    %301 = vdwg.mxu0
    %306 = vrot.lane.b32.xlu0 %v165, 48
    %v307 = vpop.permute.xlu0 %306
    %308 = vrot.lane.b32.xlu0 %v166, 48
    %v309 = vpop.permute.xlu0 %308
    %310 = vrot.lane.b32.xlu0 %v167, 48
    %v311 = vpop.permute.xlu0 %310
    %312 = vrot.lane.b32.xlu0 %v168, 48
    %v313 = vpop.permute.xlu0 %312
    %314 = vrot.lane.b32.xlu0 %v165, 64
    %v315 = vpop.permute.xlu0 %314
    %316 = vrot.lane.b32.xlu0 %v166, 64
    %v317 = vpop.permute.xlu0 %316
    %318 = vrot.lane.b32.xlu0 %v167, 64
    %v319 = vpop.permute.xlu0 %318
    %320 = vrot.lane.b32.xlu0 %v168, 64
    %v321 = vpop.permute.xlu0 %320
    %v322 = vsel %vm175, %v307, 0
    %v324 = vsel %vm175, %v309, 0
    %v326 = vsel %vm175, %v311, 0
    %v328 = vsel %vm175, %v313, 0
    %v330 = vsel %vm175, %v315, 0
    %v332 = vsel %vm175, %v317, 0
    %v334 = vsel %vm175, %v319, 0
    %v336 = vsel %vm175, %v321, 0
    %338 = vmatpush.xpose.msra.mxu0 0.0
    %339 = vmatpush.xpose.msra.mxu0 0.0
    %340 = vmatpush.xpose.msra.mxu0 0.0
    %341 = vmatpush.xpose.msra.mxu0 0.0
    %342 = vmatpush.xpose.msra.mxu0 0.0
    %343 = vmatpush.xpose.msra.mxu0 0.0
    %344 = vmatpush.xpose.msra.mxu0 0.0
    %345 = vmatpush.xpose.msra.mxu0 0.0
    %346 = vmatpush.xpose.msra.mxu0 0.0
    %347 = vmatpush.xpose.msra.mxu0 0.0
    %348 = vmatpush.xpose.msra.mxu0 0.0
    %349 = vmatpush.xpose.msra.mxu0 0.0
    %350 = vmatpush.xpose.msra.mxu0 %v336
    %351 = vmatpush.xpose.msra.mxu0 %v334
    %352 = vmatpush.xpose.msra.mxu0 %v332
    %353 = vmatpush.xpose.msra.mxu0 %v330
    %354 = vmatmul.f32.gmra.mxu0 %v322
    %v355 = vpop.f32.mrf.mxu0
    %v356 = vadd.f32 0.0, %v355
    %357 = vmatmul.f32.gmra.mxu0 %v324
    %v358 = vpop.f32.mrf.mxu0
    %v359 = vadd.f32 0.0, %v358
    %360 = vmatmul.f32.gmra.mxu0 %v326
    %v361 = vpop.f32.mrf.mxu0
    %v362 = vadd.f32 0.0, %v361
    %363 = vmatmul.f32.gmra.mxu0 %v328
    %v364 = vpop.f32.mrf.mxu0
    %v365 = vadd.f32 0.0, %v364
    %366 = vdwg.mxu0
    %v367 = vsel %vm89, %v356, -inf
    %368 = vmax.xlane.f32.xlu0 %v367
    %v369 = vpop.xlane.xlu0 %368
    %v370 = vsel %vm89, %v359, -inf
    %371 = vmax.xlane.f32.xlu0 %v370
    %v372 = vpop.xlane.xlu0 %371
    %v373 = vsel %vm89, %v362, -inf
    %374 = vmax.xlane.f32.xlu0 %v373
    %v375 = vpop.xlane.xlu0 %374
    %v376 = vsel %vm89, %v365, -inf
    %377 = vmax.xlane.f32.xlu0 %v376
    %v378 = vpop.xlane.xlu0 %377
    %v379 = vsub.f32 %v356, %v369
    %v380 = vsub.f32 %v359, %v372
    %v381 = vsub.f32 %v362, %v375
    %v382 = vsub.f32 %v365, %v378
    %v383 = vmul.f32 %v379, 1.442695
    %v384 = vpow.pop %v383
    %v385 = vmul.f32 %v380, 1.442695
    %v386 = vpow.pop %v385
    %v387 = vmul.f32 %v381, 1.442695
    %v388 = vpow.pop %v387
    %v389 = vmul.f32 %v382, 1.442695
    %v390 = vpow.pop %v389
    %v391 = vsel %vm89, %v384, 0.0
    %392 = vadd.xlane.f32.xlu0 %v391
    %v393 = vpop.xlane.xlu0 %392
    %v394 = vsel %vm89, %v386, 0.0
    %395 = vadd.xlane.f32.xlu0 %v394
    %v396 = vpop.xlane.xlu0 %395
    %v397 = vsel %vm89, %v388, 0.0
    %398 = vadd.xlane.f32.xlu0 %v397
    %v399 = vpop.xlane.xlu0 %398
    %v400 = vsel %vm89, %v390, 0.0
    %401 = vadd.xlane.f32.xlu0 %v400
    %v402 = vpop.xlane.xlu0 %401
    %v403 = vrcp.pop %v393
    %v404 = vrcp.pop %v396
    %v405 = vrcp.pop %v399
    %v406 = vrcp.pop %v402
    %v407 = vmul.f32 %v393, %v403
    %v408 = vmul.f32 %v396, %v404
    %v409 = vmul.f32 %v399, %v405
    %v410 = vmul.f32 %v402, %v406
    %v411 = vsub.f32 2.0, %v407
    %v412 = vsub.f32 2.0, %v408
    %v413 = vsub.f32 2.0, %v409
    %v414 = vsub.f32 2.0, %v410
    %v415 = vmul.f32 %v403, %v411
    %v416 = vmul.f32 %v404, %v412
    %v417 = vmul.f32 %v405, %v413
    %v418 = vmul.f32 %v406, %v414
    %v419 = vmul.f32 %v384, %v415
    %v420 = vmul.f32 %v386, %v416
    %v421 = vmul.f32 %v388, %v417
    %v422 = vmul.f32 %v390, %v418
    %423 = vxpose.xlu0.b32.start [1/16] %v419, 128
    %424 = vxpose.xlu0.b32.cont [2/16] %v420, 128
    %425 = vxpose.xlu0.b32.cont [3/16] %v421, 128
    %426 = vxpose.xlu0.b32.cont [4/16] %v422, 128
    %427 = vxpose.xlu0.b32.cont [5/16] 0.0, 128
    %428 = vxpose.xlu0.b32.cont [6/16] 0.0, 128
    %429 = vxpose.xlu0.b32.cont [7/16] 0.0, 128
    %430 = vxpose.xlu0.b32.cont [8/16] 0.0, 128
    %431 = vxpose.xlu0.b32.cont [9/16] 0.0, 128
    %432 = vxpose.xlu0.b32.cont [10/16] 0.0, 128
    %433 = vxpose.xlu0.b32.cont [11/16] 0.0, 128
    %434 = vxpose.xlu0.b32.cont [12/16] 0.0, 128
    %435 = vxpose.xlu0.b32.cont [13/16] 0.0, 128
    %436 = vxpose.xlu0.b32.cont [14/16] 0.0, 128
    %437 = vxpose.xlu0.b32.cont [15/16] 0.0, 128
    %438 = vxpose.xlu0.b32.end [16/16] 0.0, 128
    %v439 = vpop.trf.xlu0
    %v440 = vpop.trf.xlu0
    %v441 = vpop.trf.xlu0
    %v442 = vpop.trf.xlu0
    %v443 = vpop.trf.xlu0
    %v444 = vpop.trf.xlu0
    %v445 = vpop.trf.xlu0
    %v446 = vpop.trf.xlu0
    %v447 = vpop.trf.xlu0
    %v448 = vpop.trf.xlu0
    %v449 = vpop.trf.xlu0
    %v450 = vpop.trf.xlu0
    %v451 = vpop.trf.xlu0
    %v452 = vpop.trf.xlu0
    %v453 = vpop.trf.xlu0
    %v454 = vpop.trf.xlu0
    %455 = vrot.lane.b32.xlu0 %v165, 32
    %v456 = vpop.permute.xlu0 %455
    %457 = vrot.lane.b32.xlu0 %v166, 32
    %v458 = vpop.permute.xlu0 %457
    %459 = vrot.lane.b32.xlu0 %v167, 32
    %v460 = vpop.permute.xlu0 %459
    %461 = vrot.lane.b32.xlu0 %v168, 32
    %v462 = vpop.permute.xlu0 %461
    %v468 = vsel %vm89, %v439, 0
    %v471 = vsel %vm89, %v440, 0
    %v474 = vsel %vm89, %v441, 0
    %v477 = vsel %vm89, %v442, 0
    %479 = vmatpush.msra.mxu0 0.0
    %480 = vmatpush.msra.mxu0 0.0
    %481 = vmatpush.msra.mxu0 0.0
    %482 = vmatpush.msra.mxu0 0.0
    %483 = vmatpush.msra.mxu0 0.0
    %484 = vmatpush.msra.mxu0 0.0
    %485 = vmatpush.msra.mxu0 0.0
    %486 = vmatpush.msra.mxu0 0.0
    %487 = vmatpush.msra.mxu0 0.0
    %488 = vmatpush.msra.mxu0 0.0
    %489 = vmatpush.msra.mxu0 0.0
    %490 = vmatpush.msra.mxu0 0.0
    %491 = vmatpush.msra.mxu0 %v462
    %492 = vmatpush.msra.mxu0 %v460
    %493 = vmatpush.msra.mxu0 %v458
    %494 = vmatpush.msra.mxu0 %v456
    %495 = vmatmul.f32.gmra.mxu0 %v468
    %v496 = vpop.f32.mrf.mxu0
    %v497 = vadd.f32 %v79, %v496
    %498 = vmatmul.f32.gmra.mxu0 %v471
    %v499 = vpop.f32.mrf.mxu0
    %v500 = vadd.f32 %v80, %v499
    %501 = vmatmul.f32.gmra.mxu0 %v474
    %v502 = vpop.f32.mrf.mxu0
    %v503 = vadd.f32 %v81, %v502
    %504 = vmatmul.f32.gmra.mxu0 %v477
    %v505 = vpop.f32.mrf.mxu0
    %v506 = vadd.f32 %v82, %v505
    %507 = vdwg.mxu0
    %v509 = vsel %vm89, %v297, 0
    %v512 = vsel %vm89, %v300, 0
    %v515 = vsel %vm89, %v497, 0
    %v518 = vsel %vm89, %v500, 0
    %v521 = vsel %vm89, %v503, 0
    %v524 = vsel %vm89, %v506, 0
    %526 = vmatpush.xpose.msra.mxu0 0.0
    %527 = vmatpush.xpose.msra.mxu0 0.0
    %528 = vmatpush.xpose.msra.mxu0 0.0
    %529 = vmatpush.xpose.msra.mxu0 0.0
    %530 = vmatpush.xpose.msra.mxu0 0.0
    %531 = vmatpush.xpose.msra.mxu0 0.0
    %532 = vmatpush.xpose.msra.mxu0 0.0
    %533 = vmatpush.xpose.msra.mxu0 0.0
    %534 = vmatpush.xpose.msra.mxu0 0.0
    %535 = vmatpush.xpose.msra.mxu0 0.0
    %536 = vmatpush.xpose.msra.mxu0 0.0
    %537 = vmatpush.xpose.msra.mxu0 0.0
    %538 = vmatpush.xpose.msra.mxu0 %v524
    %539 = vmatpush.xpose.msra.mxu0 %v521
    %540 = vmatpush.xpose.msra.mxu0 %v518
    %541 = vmatpush.xpose.msra.mxu0 %v515
    %542 = vmatmul.f32.gmra.mxu0 %v509
    %v543 = vpop.f32.mrf.mxu0
    %v544 = vadd.f32 0.0, %v543
    %545 = vmatmul.f32.gmra.mxu0 %v512
    %v546 = vpop.f32.mrf.mxu0
    %v547 = vadd.f32 0.0, %v546
    %548 = vdwg.mxu0
    %v549 = vmul.f32 %v297, %v297
    %v550 = vmul.f32 %v300, %v300
    %v551 = vsel %vm89, %v549, 0.0
    %552 = vadd.xlane.f32.xlu0 %v551
    %v553 = vpop.xlane.xlu0 %552
    %v554 = vsel %vm89, %v550, 0.0
    %555 = vadd.xlane.f32.xlu0 %v554
    %v556 = vpop.xlane.xlu0 %555
    %v557 = vmul.f32 %v497, %v497
    %v558 = vmul.f32 %v500, %v500
    %v559 = vmul.f32 %v503, %v503
    %v560 = vmul.f32 %v506, %v506
    %v562 = vsel %vm89, 1.0, 0
    %v565 = vsel %vm89, %v557, 0
    %v568 = vsel %vm89, %v558, 0
    %v571 = vsel %vm89, %v559, 0
    %v574 = vsel %vm89, %v560, 0
    %576 = vmatpush.xpose.msra.mxu0 0.0
    %577 = vmatpush.xpose.msra.mxu0 0.0
    %578 = vmatpush.xpose.msra.mxu0 0.0
    %579 = vmatpush.xpose.msra.mxu0 0.0
    %580 = vmatpush.xpose.msra.mxu0 0.0
    %581 = vmatpush.xpose.msra.mxu0 0.0
    %582 = vmatpush.xpose.msra.mxu0 0.0
    %583 = vmatpush.xpose.msra.mxu0 0.0
    %584 = vmatpush.xpose.msra.mxu0 0.0
    %585 = vmatpush.xpose.msra.mxu0 0.0
    %586 = vmatpush.xpose.msra.mxu0 0.0
    %587 = vmatpush.xpose.msra.mxu0 0.0
    %588 = vmatpush.xpose.msra.mxu0 %v574
    %589 = vmatpush.xpose.msra.mxu0 %v571
    %590 = vmatpush.xpose.msra.mxu0 %v568
    %591 = vmatpush.xpose.msra.mxu0 %v565
    %592 = vmatmul.f32.gmra.mxu0 %v562
    %v593 = vpop.f32.mrf.mxu0
    %v594 = vadd.f32 0.0, %v593
    %595 = vdwg.mxu0
    %v596 = vmul.f32 %v544, 2.0
    %v597 = vmul.f32 %v547, 2.0
    %v598 = vsub.f32 %v553, %v596
    %v599 = vsub.f32 %v556, %v597
    %v600 = vperm.slane %v594, 0
    %v601 = vadd.f32 %v598, %v600
    %v602 = vadd.f32 %v599, %v600
    %v603 = vmax.f32 %v601, 0.0
    %v604 = vmax.f32 %v602, 0.0
    %v605 = vrsqrt.pop %v603
    %v606 = vmul.f32 %v605, %v603
    %v607 = vmul.f32 %v606, %v605
    %v608 = vmul.f32 0.5, %v607
    %v609 = vsub.f32 1.5, %v608
    %v610 = vmul.f32 %v605, %v609
    %v611 = vmul.f32 %v603, %v610
    %vm612 = vcmp.eq.f32.partialorder %v603, inf
    %v613 = vsel %vm612, %v603, %v611
    %vm614 = vcmp.eq.f32.partialorder %v603, 0.0
    %v615 = vand.u32 %v603, 2147483648
    %v616 = vsel %vm614, %v615, %v613
    %v617 = vrsqrt.pop %v604
    %v618 = vmul.f32 %v617, %v604
    %v619 = vmul.f32 %v618, %v617
    %v620 = vmul.f32 0.5, %v619
    %v621 = vsub.f32 1.5, %v620
    %v622 = vmul.f32 %v617, %v621
    %v623 = vmul.f32 %v604, %v622
    %vm624 = vcmp.eq.f32.partialorder %v604, inf
    %v625 = vsel %vm624, %v604, %v623
    %vm626 = vcmp.eq.f32.partialorder %v604, 0.0
    %v627 = vand.u32 %v604, 2147483648
    %v628 = vsel %vm626, %v627, %v625
    %v629 = vld [vmem:[#allocation8 + $0x20] sm:$0xff]
    %v630 = vld [vmem:[#allocation8 + $0x28] sm:$0xff]
    %v631 = vld [vmem:[#allocation8 + $0x30] sm:$0xff]
    %v632 = vld [vmem:[#allocation8 + $0x38] sm:$0xff]
    %v633 = vld [vmem:[#allocation8 + $0x78] sm:$0x7]
    %v634 = vperm.slane %v633, 0
    %v636 = vsel %vm89, %v616, 0
    %v639 = vsel %vm89, %v628, 0
    %641 = vmatpush.msra.mxu0 0.0
    %642 = vmatpush.msra.mxu0 0.0
    %643 = vmatpush.msra.mxu0 0.0
    %644 = vmatpush.msra.mxu0 0.0
    %645 = vmatpush.msra.mxu0 0.0
    %646 = vmatpush.msra.mxu0 0.0
    %647 = vmatpush.msra.mxu0 0.0
    %648 = vmatpush.msra.mxu0 0.0
    %649 = vmatpush.msra.mxu0 0.0
    %650 = vmatpush.msra.mxu0 0.0
    %651 = vmatpush.msra.mxu0 0.0
    %652 = vmatpush.msra.mxu0 0.0
    %653 = vmatpush.msra.mxu0 %v632
    %654 = vmatpush.msra.mxu0 %v631
    %655 = vmatpush.msra.mxu0 %v630
    %656 = vmatpush.msra.mxu0 %v629
    %657 = vmatmul.f32.gmra.mxu0 %v636
    %v658 = vpop.f32.mrf.mxu0
    %v659 = vadd.f32 %v634, %v658
    %660 = vmatmul.f32.gmra.mxu0 %v639
    %v661 = vpop.f32.mrf.mxu0
    %v662 = vadd.f32 %v634, %v661
    %663 = vdwg.mxu0
    %v664 = vmul.f32 %v659, 0.01
    %v665 = vmul.f32 %v662, 0.01
    %v666 = vmax.f32 %v659, %v664
    %v667 = vmax.f32 %v662, %v665
    %v668 = vperm.slane %v633, 1
    %v669 = vmul.f32 %v666, %v668
    %v670 = vmul.f32 %v667, %v668
    %v671 = vperm.slane %v633, 2
    %v672 = vadd.f32 %v669, %v671
    %v673 = vadd.f32 %v670, %v671
    %676 = vrot.lane.b32.xlu0 %v672, 112
    %v677 = vpop.permute.xlu0 %676
    %678 = vrot.lane.b32.xlu0 %v673, 112
    %v679 = vpop.permute.xlu0 %678
    %v680 = vsel %vm175, %v677, 0
    %v682 = vsel %vm175, %v679, 0
    %v684 = vsel %vm175, %v672, 0
    %v686 = vsel %vm175, %v673, 0
    %688 = vmatpush.xpose.msra.mxu0 0.0
    %689 = vmatpush.xpose.msra.mxu0 0.0
    %690 = vmatpush.xpose.msra.mxu0 0.0
    %691 = vmatpush.xpose.msra.mxu0 0.0
    %692 = vmatpush.xpose.msra.mxu0 0.0
    %693 = vmatpush.xpose.msra.mxu0 0.0
    %694 = vmatpush.xpose.msra.mxu0 0.0
    %695 = vmatpush.xpose.msra.mxu0 0.0
    %696 = vmatpush.xpose.msra.mxu0 0.0
    %697 = vmatpush.xpose.msra.mxu0 0.0
    %698 = vmatpush.xpose.msra.mxu0 0.0
    %699 = vmatpush.xpose.msra.mxu0 0.0
    %700 = vmatpush.xpose.msra.mxu0 0.0
    %701 = vmatpush.xpose.msra.mxu0 0.0
    %702 = vmatpush.xpose.msra.mxu0 %v686
    %703 = vmatpush.xpose.msra.mxu0 %v684
    %704 = vmatmul.f32.gmra.mxu0 %v680
    %v705 = vpop.f32.mrf.mxu0
    %v706 = vadd.f32 0.0, %v705
    %707 = vmatmul.f32.gmra.mxu0 %v682
    %v708 = vpop.f32.mrf.mxu0
    %v709 = vadd.f32 0.0, %v708
    %710 = vdwg.mxu0
    %v711 = vsel %vm175, %v706, -inf
    %712 = vmax.xlane.f32.xlu0 %v711
    %v713 = vpop.xlane.xlu0 %712
    %v714 = vsel %vm175, %v709, -inf
    %715 = vmax.xlane.f32.xlu0 %v714
    %v716 = vpop.xlane.xlu0 %715
    %v717 = vsub.f32 %v706, %v713
    %v718 = vsub.f32 %v709, %v716
    %v719 = vmul.f32 %v717, 1.442695
    %v720 = vpow.pop %v719
    %v721 = vmul.f32 %v718, 1.442695
    %v722 = vpow.pop %v721
    %v723 = vsel %vm175, %v720, 0.0
    %724 = vadd.xlane.f32.xlu0 %v723
    %v725 = vpop.xlane.xlu0 %724
    %v726 = vsel %vm175, %v722, 0.0
    %727 = vadd.xlane.f32.xlu0 %v726
    %v728 = vpop.xlane.xlu0 %727
    %v729 = vrcp.pop %v725
    %v730 = vrcp.pop %v728
    %v731 = vmul.f32 %v725, %v729
    %v732 = vmul.f32 %v728, %v730
    %v733 = vsub.f32 2.0, %v731
    %v734 = vsub.f32 2.0, %v732
    %v735 = vmul.f32 %v729, %v733
    %v736 = vmul.f32 %v730, %v734
    %v737 = vmul.f32 %v720, %v735
    %v738 = vmul.f32 %v722, %v736
    %739 = vxpose.xlu0.b32.start [1/16] %v737, 128
    %740 = vxpose.xlu0.b32.cont [2/16] %v738, 128
    %741 = vxpose.xlu0.b32.cont [3/16] 0.0, 128
    %742 = vxpose.xlu0.b32.cont [4/16] 0.0, 128
    %743 = vxpose.xlu0.b32.cont [5/16] 0.0, 128
    %744 = vxpose.xlu0.b32.cont [6/16] 0.0, 128
    %745 = vxpose.xlu0.b32.cont [7/16] 0.0, 128
    %746 = vxpose.xlu0.b32.cont [8/16] 0.0, 128
    %747 = vxpose.xlu0.b32.cont [9/16] 0.0, 128
    %748 = vxpose.xlu0.b32.cont [10/16] 0.0, 128
    %749 = vxpose.xlu0.b32.cont [11/16] 0.0, 128
    %750 = vxpose.xlu0.b32.cont [12/16] 0.0, 128
    %751 = vxpose.xlu0.b32.cont [13/16] 0.0, 128
    %752 = vxpose.xlu0.b32.cont [14/16] 0.0, 128
    %753 = vxpose.xlu0.b32.cont [15/16] 0.0, 128
    %754 = vxpose.xlu0.b32.end [16/16] 0.0, 128
    %v755 = vpop.trf.xlu0
    %v756 = vpop.trf.xlu0
    %v757 = vpop.trf.xlu0
    %v758 = vpop.trf.xlu0
    %v759 = vpop.trf.xlu0
    %v760 = vpop.trf.xlu0
    %v761 = vpop.trf.xlu0
    %v762 = vpop.trf.xlu0
    %v763 = vpop.trf.xlu0
    %v764 = vpop.trf.xlu0
    %v765 = vpop.trf.xlu0
    %v766 = vpop.trf.xlu0
    %v767 = vpop.trf.xlu0
    %v768 = vpop.trf.xlu0
    %v769 = vpop.trf.xlu0
    %v770 = vpop.trf.xlu0
    %771 = vrot.lane.b32.xlu0 %v672, 96
    %v772 = vpop.permute.xlu0 %771
    %773 = vrot.lane.b32.xlu0 %v673, 96
    %v774 = vpop.permute.xlu0 %773
    %v778 = vsel %vm175, %v755, 0
    %v781 = vsel %vm175, %v756, 0
    %783 = vmatpush.msra.mxu0 0.0
    %784 = vmatpush.msra.mxu0 0.0
    %785 = vmatpush.msra.mxu0 0.0
    %786 = vmatpush.msra.mxu0 0.0
    %787 = vmatpush.msra.mxu0 0.0
    %788 = vmatpush.msra.mxu0 0.0
    %789 = vmatpush.msra.mxu0 0.0
    %790 = vmatpush.msra.mxu0 0.0
    %791 = vmatpush.msra.mxu0 0.0
    %792 = vmatpush.msra.mxu0 0.0
    %793 = vmatpush.msra.mxu0 0.0
    %794 = vmatpush.msra.mxu0 0.0
    %795 = vmatpush.msra.mxu0 0.0
    %796 = vmatpush.msra.mxu0 0.0
    %797 = vmatpush.msra.mxu0 %v774
    %798 = vmatpush.msra.mxu0 %v772
    %799 = vmatmul.f32.gmra.mxu0 %v778
    %v800 = vpop.f32.mrf.mxu0
    %v801 = vadd.f32 %v616, %v800
    %802 = vmatmul.f32.gmra.mxu0 %v781
    %v803 = vpop.f32.mrf.mxu0
    %v804 = vadd.f32 %v628, %v803
    %805 = vdwg.mxu0
    %v806 = vld [vmem:[#allocation8 + $0x40] sm:$0xff]
    %v807 = vld [vmem:[#allocation8 + $0x48] sm:$0xff]
    %v808 = vld [vmem:[#allocation8 + $0x50] sm:$0xff]
    %v809 = vld [vmem:[#allocation8 + $0x58] sm:$0xff]
    %v810 = vld [vmem:[#allocation8 + $0x80] sm:$0x1]
    %v811 = vperm.slane %v810, 0
    %v813 = vsel %vm89, %v801, 0
    %v816 = vsel %vm89, %v804, 0
    %818 = vmatpush.msra.mxu0 0.0
    %819 = vmatpush.msra.mxu0 0.0
    %820 = vmatpush.msra.mxu0 0.0
    %821 = vmatpush.msra.mxu0 0.0
    %822 = vmatpush.msra.mxu0 0.0
    %823 = vmatpush.msra.mxu0 0.0
    %824 = vmatpush.msra.mxu0 0.0
    %825 = vmatpush.msra.mxu0 0.0
    %826 = vmatpush.msra.mxu0 0.0
    %827 = vmatpush.msra.mxu0 0.0
    %828 = vmatpush.msra.mxu0 0.0
    %829 = vmatpush.msra.mxu0 0.0
    %830 = vmatpush.msra.mxu0 %v809
    %831 = vmatpush.msra.mxu0 %v808
    %832 = vmatpush.msra.mxu0 %v807
    %833 = vmatpush.msra.mxu0 %v806
    %834 = vmatmul.f32.gmra.mxu0 %v813
    %v835 = vpop.f32.mrf.mxu0
    %v836 = vadd.f32 %v811, %v835
    %837 = vmatmul.f32.gmra.mxu0 %v816
    %v838 = vpop.f32.mrf.mxu0
    %v839 = vadd.f32 %v811, %v838
    %840 = vdwg.mxu0
    %v841 = vmul.f32 %v836, 0.01
    %v842 = vmul.f32 %v839, 0.01
    %v843 = vmax.f32 %v836, %v841
    %v844 = vmax.f32 %v839, %v842
    %v845 = vtanh.pop %v836
    %v846 = vtanh.pop %v839
    %847 = vxpose.xlu0.b32.start [1/16] %v843, 128
    %848 = vxpose.xlu0.b32.cont [2/16] %v844, 128
    %849 = vxpose.xlu0.b32.cont [3/16] 0.0, 128
    %850 = vxpose.xlu0.b32.cont [4/16] 0.0, 128
    %851 = vxpose.xlu0.b32.cont [5/16] 0.0, 128
    %852 = vxpose.xlu0.b32.cont [6/16] 0.0, 128
    %853 = vxpose.xlu0.b32.cont [7/16] 0.0, 128
    %854 = vxpose.xlu0.b32.cont [8/16] 0.0, 128
    %855 = vxpose.xlu0.b32.cont [9/16] 0.0, 128
    %856 = vxpose.xlu0.b32.cont [10/16] 0.0, 128
    %857 = vxpose.xlu0.b32.cont [11/16] 0.0, 128
    %858 = vxpose.xlu0.b32.cont [12/16] 0.0, 128
    %859 = vxpose.xlu0.b32.cont [13/16] 0.0, 128
    %860 = vxpose.xlu0.b32.cont [14/16] 0.0, 128
    %861 = vxpose.xlu0.b32.cont [15/16] 0.0, 128
    %862 = vxpose.xlu0.b32.end [16/16] 0.0, 128
    %v863 = vpop.trf.xlu0
    %v864 = vpop.trf.xlu0
    %v865 = vpop.trf.xlu0
    %v866 = vpop.trf.xlu0
    %v867 = vpop.trf.xlu0
    %v868 = vpop.trf.xlu0
    %v869 = vpop.trf.xlu0
    %v870 = vpop.trf.xlu0
    %v871 = vpop.trf.xlu0
    %v872 = vpop.trf.xlu0
    %v873 = vpop.trf.xlu0
    %v874 = vpop.trf.xlu0
    %v875 = vpop.trf.xlu0
    %v876 = vpop.trf.xlu0
    %v877 = vpop.trf.xlu0
    %v878 = vpop.trf.xlu0
    %881 = vrot.lane.b32.xlu0 %v845, 112
    %v882 = vpop.permute.xlu0 %881
    %883 = vrot.lane.b32.xlu0 %v846, 112
    %v884 = vpop.permute.xlu0 %883
    %v888 = vsel %vm175, %v863, 0
    %v891 = vsel %vm175, %v864, 0
    %893 = vmatpush.msra.mxu0 0.0
    %894 = vmatpush.msra.mxu0 0.0
    %895 = vmatpush.msra.mxu0 0.0
    %896 = vmatpush.msra.mxu0 0.0
    %897 = vmatpush.msra.mxu0 0.0
    %898 = vmatpush.msra.mxu0 0.0
    %899 = vmatpush.msra.mxu0 0.0
    %900 = vmatpush.msra.mxu0 0.0
    %901 = vmatpush.msra.mxu0 0.0
    %902 = vmatpush.msra.mxu0 0.0
    %903 = vmatpush.msra.mxu0 0.0
    %904 = vmatpush.msra.mxu0 0.0
    %905 = vmatpush.msra.mxu0 0.0
    %906 = vmatpush.msra.mxu0 0.0
    %907 = vmatpush.msra.mxu0 %v884
    %908 = vmatpush.msra.mxu0 %v882
    %909 = vmatmul.f32.gmra.mxu0 %v888
    %v910 = vpop.f32.mrf.mxu0
    %v911 = vadd.f32 0.0, %v910
    %912 = vmatmul.f32.gmra.mxu0 %v891
    %v913 = vpop.f32.mrf.mxu0
    %v914 = vadd.f32 0.0, %v913
    %915 = vdwg.mxu0
    %v916 = vld [vmem:[#allocation8 + $0x60] sm:$0xff]
    %v917 = vld [vmem:[#allocation8 + $0x68] sm:$0xff]
    %919 = vrot.lane.b32.xlu0 %v811, 96
    %v920 = vpop.permute.xlu0 %919
    %v923 = vsel %vm175, %v911, 0
    %v926 = vsel %vm175, %v914, 0
    %928 = vmatpush.msra.mxu0 0.0
    %929 = vmatpush.msra.mxu0 0.0
    %930 = vmatpush.msra.mxu0 0.0
    %931 = vmatpush.msra.mxu0 0.0
    %932 = vmatpush.msra.mxu0 0.0
    %933 = vmatpush.msra.mxu0 0.0
    %934 = vmatpush.msra.mxu0 0.0
    %935 = vmatpush.msra.mxu0 0.0
    %936 = vmatpush.msra.mxu0 0.0
    %937 = vmatpush.msra.mxu0 0.0
    %938 = vmatpush.msra.mxu0 0.0
    %939 = vmatpush.msra.mxu0 0.0
    %940 = vmatpush.msra.mxu0 0.0
    %941 = vmatpush.msra.mxu0 0.0
    %942 = vmatpush.msra.mxu0 %v917
    %943 = vmatpush.msra.mxu0 %v916
    %944 = vmatmul.f32.gmra.mxu0 %v923
    %v945 = vpop.f32.mrf.mxu0
    %v946 = vadd.f32 %v920, %v945
    %947 = vmatmul.f32.gmra.mxu0 %v926
    %v948 = vpop.f32.mrf.mxu0
    %v949 = vadd.f32 %v920, %v948
    %950 = vdwg.mxu0
    %v951 = vmul.f32 %v946, 0.01
    %v952 = vmul.f32 %v949, 0.01
    %v953 = vmax.f32 %v946, %v951
    %v954 = vmax.f32 %v949, %v952
    %956 = vrot.lane.b32.xlu0 %v810, 64
    %v957 = vpop.permute.xlu0 %956
    %v958 = vsel %vm175, %v957, 0
    %960 = vmatpush.msra.mxu0 0.0
    %961 = vmatpush.msra.mxu0 0.0
    %962 = vmatpush.msra.mxu0 0.0
    %963 = vmatpush.msra.mxu0 0.0
    %964 = vmatpush.msra.mxu0 0.0
    %965 = vmatpush.msra.mxu0 0.0
    %966 = vmatpush.msra.mxu0 0.0
    %967 = vmatpush.msra.mxu0 0.0
    %968 = vmatpush.msra.mxu0 0.0
    %969 = vmatpush.msra.mxu0 0.0
    %970 = vmatpush.msra.mxu0 0.0
    %971 = vmatpush.msra.mxu0 0.0
    %972 = vmatpush.msra.mxu0 0.0
    %973 = vmatpush.msra.mxu0 0.0
    %974 = vmatpush.msra.mxu0 %v954
    %975 = vmatpush.msra.mxu0 %v953
    %976 = vmatmul.f32.gmra.mxu0 %v958
    %v977 = vpop.f32.mrf.mxu0
    %v978 = vadd.f32 0.0, %v977
    %979 = vdwg.mxu0
    %v980 = vlaneseq
    %v981 = vand.u32 %v980, 127
    %s982 = sld [smem:[#allocation2 + $0x1]]
    %v983 = vstv %s982
    %vm984 = vcmp.ge.s32.totalorder %v981, %v983
    %v985 = vsel %vm984, 1, 0
    %s986 = sld [smem:[#allocation2 + $0x2]]
    %v987 = vstv %s986
    %vm988 = vcmp.ge.s32.totalorder %v981, %v987
    %v989 = vsel %vm988, 1, 0
    %v990 = vadd.s32 %v985, %v989
    %s991 = sld [smem:[#allocation2 + $0x3]]
    %v992 = vstv %s991
    %vm993 = vcmp.ge.s32.totalorder %v981, %v992
    %v994 = vsel %vm993, 1, 0
    %v995 = vadd.s32 %v990, %v994
    %s996 = sld [smem:[#allocation2]]
    %v997 = vstv %s996
    %vm998 = vcmp.ge.s32.totalorder %v981, %v997
    %s999 = sld [smem:[#allocation2 + $0x4]]
    %v1000 = vstv %s999
    %vm1001 = vcmp.lt.s32.totalorder %v981, %v1000
    %vm1002 = vmand %vm998, %vm1001
    %v1003 = vlaneseq
    %v1004 = vshrl.u32 %v1003, 7
    %vm1005 = vcmp.eq.s32.totalorder %v1004, %v995
    %v1006 = vsel %vm1002, 1, 0
    %vm1007 = vcmp.eq.s32.totalorder %v1006, 1
    %vm1008 = vmand %vm1005, %vm1007
    %v1009 = vperm.slane %v978, 0
    %v1010 = vsel %vm1008, %v1009, -1e+30
    %vm1011 = vcmask 257024
    %v1012 = vsel %vm1011, %v1010, -inf
    %1013 = vmax.xlane.f32.xlu0 %v1012
    %v1014 = vpop.xlane.xlu0 %1013
    %vm1015 = vcmp.eq.f32.partialorder %v1009, %v1014
    %vm1016 = vmand %vm1008, %vm1015
    %v1017 = vsel %vm1016, %v981, 32
    %v1018 = vsel %vm1011, %v1017, 2147483647
    %v1019 = vand.u32 %v1018, 65535
    %v1020 = vshra.s32 %v1018, 16
    %v1021 = vcvt.s32.f32 %v1019
    %v1022 = vcvt.s32.f32 %v1020
    %1023 = vmin.xlane.f32.xlu0 %v1022
    %v1024 = vpop.xlane.xlu0 %1023
    %vm1025 = vcmp.eq.f32.partialorder %v1022, %v1024
    %v1026 = vsel %vm1025, %v1021, inf
    %1027 = vmin.xlane.f32.xlu0 %v1026
    %v1028 = vpop.xlane.xlu0 %1027
    %v1029 = vcvt.f32.s32 %v1028
    %v1030 = vcvt.f32.s32 %v1024
    %v1031 = vshll.u32 %v1030, 16
    %v1032 = vadd.s32 %v1031, %v1029
    %vm1033 = vcmp.eq.s32.totalorder %v981, %v1032
    %v1034 = vsel %vm1033, 1, 0
    %v1035 = vcvt.s32.f32 %v1034
    %v1037 = vsel %vm89, %v1035, 0
    %1039 = vmatpush.xpose.msra.mxu0 0.0
    %1040 = vmatpush.xpose.msra.mxu0 0.0
    %1041 = vmatpush.xpose.msra.mxu0 0.0
    %1042 = vmatpush.xpose.msra.mxu0 0.0
    %1043 = vmatpush.xpose.msra.mxu0 0.0
    %1044 = vmatpush.xpose.msra.mxu0 0.0
    %1045 = vmatpush.xpose.msra.mxu0 0.0
    %1046 = vmatpush.xpose.msra.mxu0 0.0
    %1047 = vmatpush.xpose.msra.mxu0 0.0
    %1048 = vmatpush.xpose.msra.mxu0 0.0
    %1049 = vmatpush.xpose.msra.mxu0 0.0
    %1050 = vmatpush.xpose.msra.mxu0 0.0
    %1051 = vmatpush.xpose.msra.mxu0 0.0
    %1052 = vmatpush.xpose.msra.mxu0 0.0
    %1053 = vmatpush.xpose.msra.mxu0 0.0
    %1054 = vmatpush.xpose.msra.mxu0 %v1037
    %1055 = vmatmul.f32.gmra.mxu0 %v813
    %v1056 = vpop.f32.mrf.mxu0
    %v1057 = vadd.f32 0.0, %v1056
    %1058 = vmatmul.f32.gmra.mxu0 %v816
    %v1059 = vpop.f32.mrf.mxu0
    %v1060 = vadd.f32 0.0, %v1059
    %1061 = vdwg.mxu0
    %vm1062 = vcmask 31744
    %v1063 = vsel %vm1062, %v1057, -inf
    %1064 = vmax.xlane.f32.xlu0 %v1063
    %v1065 = vpop.xlane.xlu0 %1064
    %v1066 = vsel %vm1062, %v1060, -inf
    %1067 = vmax.xlane.f32.xlu0 %v1066
    %v1068 = vpop.xlane.xlu0 %1067
    %v1069 = vsub.f32 %v1057, %v1065
    %v1070 = vsub.f32 %v1060, %v1068
    %v1071 = vmul.f32 %v1069, 1.442695
    %v1072 = vpow.pop %v1071
    %v1073 = vmul.f32 %v1070, 1.442695
    %v1074 = vpow.pop %v1073
    %v1075 = vsel %vm1062, %v1072, 0.0
    %1076 = vadd.xlane.f32.xlu0 %v1075
    %v1077 = vpop.xlane.xlu0 %1076
    %v1078 = vsel %vm1062, %v1074, 0.0
    %1079 = vadd.xlane.f32.xlu0 %v1078
    %v1080 = vpop.xlane.xlu0 %1079
    %v1081 = vrcp.pop %v1077
    %v1082 = vrcp.pop %v1080
    %v1083 = vmul.f32 %v1077, %v1081
    %v1084 = vmul.f32 %v1080, %v1082
    %v1085 = vsub.f32 2.0, %v1083
    %v1086 = vsub.f32 2.0, %v1084
    %v1087 = vmul.f32 %v1081, %v1085
    %v1088 = vmul.f32 %v1082, %v1086
    %v1089 = vmul.f32 %v1072, %v1087
    %v1090 = vmul.f32 %v1074, %v1088
    %1091 = vst.msk [vmem:[%s4] sm:$0xff] %vm1062, %v1089
    %1092 = vst.msk [vmem:[%s4 + $0x8] sm:$0xff] %vm1062, %v1090
    // Predicated region
    $region34: #{knowledge_bag_fuse_forward.1} parent=1 // pred_check
      _
    $region35: #{knowledge_bag_fuse_forward.1} parent=1 // pred_check_branch
      %1094 = sbr.rel (0) target = $region37
    $region36: #{knowledge_bag_fuse_forward.1} parent=1 // pred_region
      _
    $region37: #{knowledge_bag_fuse_forward.1} parent=1 // pred_fallthru
      _
    // Predicated region
    $region38: #{knowledge_bag_fuse_forward.1} parent=1 // pred_check
      _
    $region39: #{knowledge_bag_fuse_forward.1} parent=1 // pred_check_branch
      %1096 = sbr.rel (0) target = $region41
    $region40: #{knowledge_bag_fuse_forward.1} parent=1 // pred_region
      _
    $region41: #{knowledge_bag_fuse_forward.1} parent=1 // pred_fallthru
      _
    %1097 = vsyncpa [#allocation3], 1
    %1098 = vsyncpa [#allocation7], 1
    %1099 = vsyncpa [#allocation4], 1

</llo_original>
